<compile_context>
chip_gen: v7x
topology: tpu7x:2x2x1
jax: 0.10.0
libtpu: 0.0.40
codegen_flags: <defaults>
</compile_context>

<pallas_src>
import functools

import jax
import jax.numpy as jnp
from jax.experimental import pallas as pl
from jax.experimental.pallas import tpu as pltpu


# --------------------------------------------------------------------------
# Fused forward kernel (one launch for the entire layer chain)
# --------------------------------------------------------------------------
def _fused_mlp_kernel(tid_ref, x_ref, *refs, descs, num_tasks, compute_dtype):
    """Run the full layer chain on one (Din, b_tile) activation tile.

    refs = [W0, b0, W1, b1, ..., out_ref].
    Layout: activations (features, batch); shared weights (Dout, Din);
    task weights concatenated over tasks -> (T*Dout, Din); biases (rows, 1).
    descs[i] = ("shared" | "task", relu_before).  Static Python loop fully
    unrolls so the scheduler overlaps each layer's MXU work with the previous
    layer's bias/ReLU VPU work.
    """
    out_ref = refs[-1]
    param_refs = refs[:-1]

    has_task = any(kind == "task" for kind, _ in descs)
    tids = tid_ref[...] if has_task else None              # (1, b_tile) int32

    h = x_ref[...]                                         # (Din, b_tile) bf16

    ref_iter = iter(param_refs)
    for kind, relu_before in descs:
        w_ref = next(ref_iter)
        b_ref = next(ref_iter)
        if relu_before:
            h = jnp.maximum(h, 0.0)
        # TODO(synk): dropout_lastmlp is identity here (inference semantics).
        hx = h.astype(compute_dtype)                       # no-op on layer 0
        # One MXU matmul per layer (task weights are pre-concatenated).
        y = jnp.dot(w_ref[...], hx,
                    preferred_element_type=jnp.float32) + b_ref[...]
        if kind == "task":
            dout = w_ref.shape[0] // num_tasks
            sel = y[0:dout, :]
            for t in range(1, num_tasks):
                sel = jnp.where(tids == t, y[t * dout:(t + 1) * dout, :], sel)
            y = sel
        h = y                                              # (Dout, b_tile) f32

    h = jax.nn.sigmoid(h)                                  # EUP
    out_ref[...] = h.astype(out_ref.dtype)                 # lane-dense store


def _round_up(n, m):
    return ((n + m - 1) // m) * m


def _pick_b_tile(B):
    """Batch tile: multiple of 128, big enough to amortize per-step overhead,
    >= 2 grid steps when the batch allows (both v7x TensorCores get work),
    and at most ~12% padding waste."""
    Bp128 = _round_up(max(B, 1), 128)
    if Bp128 <= 256:
        return 128
    for t in (2048, 1024, 512, 256, 128):
        Bp = _round_up(B, t)
        if Bp // t >= 2 and (Bp - B) * 8 <= Bp:
            return t
    return 128


@functools.partial(
    jax.jit,
    static_argnames=("descs", "num_tasks", "compute_dtype", "b_tile"))
def fused_mlp_forward(x, task_idx, flat_params, *, descs, num_tasks,
                      compute_dtype=jnp.bfloat16, b_tile=None):
    """Single fused pallas_call for the whole MLP chain.  x: (B, Din) -> (B, 1)."""
    B, din = x.shape
    last_kind = descs[-1][0]
    out_dim = flat_params[-1].shape[0] // (num_tasks if last_kind == "task" else 1)

    if b_tile is None:
        b_tile = _pick_b_tile(B)
    Bp = _round_up(B, b_tile)

    # Transposed bf16 input stream (features on sublanes, batch on lanes).
    # TODO(synk): upstream should ideally hand us a bf16 (Din, B) slab directly
    # so this cast/transpose (and the <=1-tile pad) disappears.
    xT = x.T.astype(compute_dtype)
    tid = task_idx.astype(jnp.int32).reshape(1, B)
    if Bp != B:
        xT = jnp.pad(xT, ((0, 0), (0, Bp - B)))
        tid = jnp.pad(tid, ((0, 0), (0, Bp - B)))

    grid = (Bp // b_tile,)

    in_specs = [
        pl.BlockSpec((1, b_tile), lambda i: (0, i)),       # per-row task ids
        pl.BlockSpec((din, b_tile), lambda i: (0, i)),     # activations
    ]
    for p in flat_params:                                  # weights: resident
        in_specs.append(pl.BlockSpec(p.shape, lambda i: (0, 0)))
    out_spec = pl.BlockSpec((out_dim, b_tile), lambda i: (0, i))

    # ---- cost hint + VMEM budget (static Python ints) ----------------------
    weights = flat_params[0::2]
    flops = sum(2 * Bp * int(w.shape[0]) * int(w.shape[1]) for w in weights)
    param_bytes = sum(int(p.size) * p.dtype.itemsize for p in flat_params)
    io_bytes = Bp * din * 2 + Bp * 4 + Bp * out_dim * 4 + param_bytes
    max_rows = max(int(w.shape[0]) for w in weights)
    act_bytes = 4 * max_rows * b_tile * 4                  # ~4 live f32 copies
    stream_bytes = 2 * b_tile * (din * 2 + 8 * 4 + out_dim * 4)  # dbl-buffered
    vmem_limit = int(min(64 * 2**20,
                         param_bytes + act_bytes + stream_bytes + 8 * 2**20))

    kernel = functools.partial(_fused_mlp_kernel, descs=descs,
                               num_tasks=num_tasks,
                               compute_dtype=compute_dtype)
    out = pl.pallas_call(
        kernel,
        out_shape=jax.ShapeDtypeStruct((out_dim, Bp), jnp.float32),
        grid_spec=pltpu.PrefetchScalarGridSpec(
            num_scalar_prefetch=0, grid=grid,
            in_specs=in_specs, out_specs=out_spec),
        compiler_params=pltpu.CompilerParams(
            dimension_semantics=("parallel",),
            vmem_limit_bytes=vmem_limit),
        cost_estimate=pl.CostEstimate(flops=flops,
                                      transcendentals=Bp * out_dim,
                                      bytes_accessed=io_bytes),
    )(tid, xT, *flat_params)
    return out[:, :B].T                                    # (B, out_dim)


# --------------------------------------------------------------------------
# Pure-JAX reference (mirrors the kernel math: bf16 matmul, f32 accumulate)
# --------------------------------------------------------------------------
def _reference_forward(x, task_idx, flat_params, *, descs, num_tasks,
                       compute_dtype=jnp.bfloat16):
    h = x.T.astype(compute_dtype)
    tids = task_idx.astype(jnp.int32).reshape(1, -1)
    it = iter(flat_params)
    for kind, relu_before in descs:
        w = next(it); b = next(it)
        if relu_before:
            h = jnp.maximum(h, 0.0)
        hx = h.astype(compute_dtype)
        y = jnp.dot(w.astype(compute_dtype), hx,
                    preferred_element_type=jnp.float32) + b
        if kind == "task":
            dout = w.shape[0] // num_tasks
            sel = y[0:dout]
            for t in range(1, num_tasks):
                sel = jnp.where(tids == t, y[t * dout:(t + 1) * dout], sel)
            y = sel
        h = y
    return jax.nn.sigmoid(h).T


# --------------------------------------------------------------------------
# Parameter construction (matches the module's __init__ shapes / layer order)
# --------------------------------------------------------------------------
def _init_linear(key, din, dout, compute_dtype):
    kw, kb = jax.random.split(key)
    bound = 1.0 / float(din) ** 0.5
    w = jax.random.uniform(kw, (dout, din), jnp.float32, -bound, bound)
    b = jax.random.uniform(kb, (dout,), jnp.float32, -bound, bound)
    # weight in nn.Linear layout (out, in), bf16 for the MXU; bias (out,1) f32
    return w.astype(compute_dtype), b.reshape(dout, 1)


def _init_task_linear(keys, din, dout, compute_dtype):
    ws, bs = zip(*[_init_linear(k, din, dout, compute_dtype) for k in keys])
    # Concatenate along the output dim -> one matmul per task layer.
    return jnp.concatenate(ws, 0), jnp.concatenate(bs, 0)  # (T*dout,din),(T*dout,1)


def build_model(key, cfg, compute_dtype=jnp.bfloat16):
    """Returns {"multitask": (descs, flat_params), "single": (...)}.

    descs: tuple of ("shared"|"task", relu_before) in forward order.
    flat_params: flat tuple [W0, b0, W1, b1, ...] matching descs order.
    """
    T = len(cfg["tasks"])
    Din, D = cfg["dim_mlpinput"], cfg["mlp_layers_d"]
    key_iter = iter(jax.random.split(key, 1024))

    def shared(din, dout):
        return _init_linear(next(key_iter), din, dout, compute_dtype)

    def task(din, dout):
        return _init_task_linear([next(key_iter) for _ in range(T)],
                                 din, dout, compute_dtype)

    # ---- multitask branch: sharemlp1 -> task1 -> sharemlp2 -> task2 -------
    mt_descs, mt_params = [], []

    def add(kind, relu, wb):
        mt_descs.append((kind, relu))
        mt_params.extend(wb)

    add("shared", False, shared(Din, D))                    # sharemlp1[0] raw
    for _ in range(cfg["mlp_layers_shared1"]):              # sharemlp1[1:]
        add("shared", True, shared(D, D))
    for _ in range(cfg["mlp_layers_task1"]):                # task1 layers
        add("task", True, task(D, D))
    add("shared", False, shared(D, D))                      # sharemlp2[0] raw
    for _ in range(cfg["mlp_layers_shared2"] - 1):          # sharemlp2[1:]
        add("shared", True, shared(D, D))
    for _ in range(cfg["mlp_layers_task2"]):                # task2 D->D
        add("task", True, task(D, D))
    add("task", True, task(D, 64))                          # task2[-2] D->64
    add("task", False, task(64, 1))                         # task2[-1] raw

    # ---- non-multitask branch: self.mlp ------------------------------------
    st_descs, st_params = [], []

    def add_s(relu, wb):
        st_descs.append(("shared", relu))
        st_params.extend(wb)

    add_s(False, shared(Din, D))                            # mlp[0] raw
    for _ in range(cfg["mlp_layers"]):                      # mlp[1:-2]
        add_s(True, shared(D, D))
    add_s(False, shared(D, 64))                             # mlp[-2] raw
    add_s(False, shared(64, 1))                             # mlp[-1] raw

    return {"multitask": (tuple(mt_descs), tuple(mt_params)),
            "single": (tuple(st_descs), tuple(st_params))}


# --------------------------------------------------------------------------
if __name__ == "__main__":
    cfg = dict(
        dim_mlpinput=16,
        mlp_layers_d=32,
        mlp_layers=2,
        mlp_layers_shared1=2,
        mlp_layers_shared2=2,
        mlp_layers_task1=1,
        mlp_layers_task2=1,
        tasks=[0, 1],
        multitask=True,
        dropout_lastmlp=0.0,
    )

    root = jax.random.PRNGKey(0)
    k_params, k_x = jax.random.split(root)
    model = build_model(k_params, cfg)

    B = 4
    x = jax.random.normal(k_x, (B, cfg["dim_mlpinput"]), jnp.float32)
    task_idx = jnp.array([0, 1, 0, 1], dtype=jnp.int32)     # per-row task id
    T = len(cfg["tasks"])

    if cfg["multitask"]:
        descs, params = model["multitask"]
    else:
        descs, params = model["single"]
    out = fused_mlp_forward(x, task_idx, params, descs=descs, num_tasks=T)
    out = jax.block_until_ready(out)
    assert out.shape == (B, 1) and out.dtype == jnp.float32
    assert bool(jnp.all((out > 0.0) & (out < 1.0)))         # post-sigmoid range
    ref = _reference_forward(x, task_idx, params, descs=descs, num_tasks=T)
    assert bool(jnp.allclose(out, ref, atol=2e-3, rtol=2e-3)), (out, ref)

    # also exercise the non-multitask branch once (fused as well)
    descs_s, params_s = model["single"]
    out2 = jax.block_until_ready(
        fused_mlp_forward(x, task_idx, params_s, descs=descs_s, num_tasks=T))
    assert out2.shape == (B, 1)
    ref2 = _reference_forward(x, task_idx, params_s, descs=descs_s, num_tasks=T)
    assert bool(jnp.allclose(out2, ref2, atol=2e-3, rtol=2e-3)), (out2, ref2)

    print("KERNEL_OK")
</pallas_src>

<mosaic_0001>
module attributes {stable_mosaic.version = 11 : i64} {
  func.func @_fused_mlp_kernel(%arg0: i32, %arg1: memref<1x128xi32, #tpu.memory_space<vmem>>, %arg2: memref<16x128xbf16, #tpu.memory_space<vmem>>, %arg3: memref<32x16xbf16, #tpu.memory_space<vmem>>, %arg4: memref<32x1xf32, #tpu.memory_space<vmem>>, %arg5: memref<32x32xbf16, #tpu.memory_space<vmem>>, %arg6: memref<32x1xf32, #tpu.memory_space<vmem>>, %arg7: memref<32x32xbf16, #tpu.memory_space<vmem>>, %arg8: memref<32x1xf32, #tpu.memory_space<vmem>>, %arg9: memref<64x32xbf16, #tpu.memory_space<vmem>>, %arg10: memref<64x1xf32, #tpu.memory_space<vmem>>, %arg11: memref<32x32xbf16, #tpu.memory_space<vmem>>, %arg12: memref<32x1xf32, #tpu.memory_space<vmem>>, %arg13: memref<32x32xbf16, #tpu.memory_space<vmem>>, %arg14: memref<32x1xf32, #tpu.memory_space<vmem>>, %arg15: memref<64x32xbf16, #tpu.memory_space<vmem>>, %arg16: memref<64x1xf32, #tpu.memory_space<vmem>>, %arg17: memref<128x32xbf16, #tpu.memory_space<vmem>>, %arg18: memref<128x1xf32, #tpu.memory_space<vmem>>, %arg19: memref<2x64xbf16, #tpu.memory_space<vmem>>, %arg20: memref<2x1xf32, #tpu.memory_space<vmem>>, %arg21: memref<1x128xf32, #tpu.memory_space<vmem>>) attributes {dimension_semantics = [#tpu.dimension_semantics<parallel>], iteration_bounds = array<i64: 1>, scalar_prefetch = 0 : i64, scratch_operands = 0 : i64, tpu.core_type = #tpu.core_type<tc>, window_params = [{transform_indices = @transform_0, window_bounds = array<i64: 1, 128>}, {transform_indices = @transform_1, window_bounds = array<i64: 16, 128>}, {pipeline_mode = #tpu.pipeline_mode<synchronous>, transform_indices = @transform_2, window_bounds = array<i64: 32, 16>}, {pipeline_mode = #tpu.pipeline_mode<synchronous>, transform_indices = @transform_3, window_bounds = array<i64: 32, 1>}, {pipeline_mode = #tpu.pipeline_mode<synchronous>, transform_indices = @transform_4, window_bounds = array<i64: 32, 32>}, {pipeline_mode = #tpu.pipeline_mode<synchronous>, transform_indices = @transform_5, window_bounds = array<i64: 32, 1>}, {pipeline_mode = #tpu.pipeline_mode<synchronous>, transform_indices = @transform_6, window_bounds = array<i64: 32, 32>}, {pipeline_mode = #tpu.pipeline_mode<synchronous>, transform_indices = @transform_7, window_bounds = array<i64: 32, 1>}, {pipeline_mode = #tpu.pipeline_mode<synchronous>, transform_indices = @transform_8, window_bounds = array<i64: 64, 32>}, {pipeline_mode = #tpu.pipeline_mode<synchronous>, transform_indices = @transform_9, window_bounds = array<i64: 64, 1>}, {pipeline_mode = #tpu.pipeline_mode<synchronous>, transform_indices = @transform_10, window_bounds = array<i64: 32, 32>}, {pipeline_mode = #tpu.pipeline_mode<synchronous>, transform_indices = @transform_11, window_bounds = array<i64: 32, 1>}, {pipeline_mode = #tpu.pipeline_mode<synchronous>, transform_indices = @transform_12, window_bounds = array<i64: 32, 32>}, {pipeline_mode = #tpu.pipeline_mode<synchronous>, transform_indices = @transform_13, window_bounds = array<i64: 32, 1>}, {pipeline_mode = #tpu.pipeline_mode<synchronous>, transform_indices = @transform_14, window_bounds = array<i64: 64, 32>}, {pipeline_mode = #tpu.pipeline_mode<synchronous>, transform_indices = @transform_15, window_bounds = array<i64: 64, 1>}, {pipeline_mode = #tpu.pipeline_mode<synchronous>, transform_indices = @transform_16, window_bounds = array<i64: 128, 32>}, {pipeline_mode = #tpu.pipeline_mode<synchronous>, transform_indices = @transform_17, window_bounds = array<i64: 128, 1>}, {pipeline_mode = #tpu.pipeline_mode<synchronous>, transform_indices = @transform_18, window_bounds = array<i64: 2, 64>}, {pipeline_mode = #tpu.pipeline_mode<synchronous>, transform_indices = @transform_19, window_bounds = array<i64: 2, 1>}, {transform_indices = @transform_20, window_bounds = array<i64: 1, 128>}]} {
    %c0 = arith.constant 0 : index
    %c0_0 = arith.constant 0 : index
    %0 = vector.load %arg1[%c0, %c0_0] : memref<1x128xi32, #tpu.memory_space<vmem>>, vector<1x128xi32>
    %c0_1 = arith.constant 0 : index
    %c0_2 = arith.constant 0 : index
    %1 = vector.load %arg2[%c0_1, %c0_2] : memref<16x128xbf16, #tpu.memory_space<vmem>>, vector<16x128xbf16>
    %c0_3 = arith.constant 0 : index
    %c0_4 = arith.constant 0 : index
    %2 = vector.load %arg3[%c0_3, %c0_4] : memref<32x16xbf16, #tpu.memory_space<vmem>>, vector<32x16xbf16>
    %cst = arith.constant dense<0.000000e+00> : vector<32x128xf32>
    %3 = tpu.matmul %2, %1, %cst {dimension_numbers = #tpu.dot_dimension_numbers<[1], [0], [0], [1], [0, 0, 1, 1], [], []>} : vector<32x16xbf16>, vector<16x128xbf16>, vector<32x128xf32> -> vector<32x128xf32>
    %c0_5 = arith.constant 0 : index
    %c0_6 = arith.constant 0 : index
    %4 = vector.load %arg4[%c0_5, %c0_6] : memref<32x1xf32, #tpu.memory_space<vmem>>, vector<32x1xf32>
    %5 = vector.broadcast %4 : vector<32x1xf32> to vector<32x128xf32>
    %6 = arith.addf %3, %5 : vector<32x128xf32>
    %cst_7 = arith.constant 0.000000e+00 : f32
    %7 = vector.broadcast %cst_7 : f32 to vector<32x128xf32>
    %8 = arith.maximumf %6, %7 : vector<32x128xf32>
    %9 = arith.truncf %8 : vector<32x128xf32> to vector<32x128xbf16>
    %c0_8 = arith.constant 0 : index
    %c0_9 = arith.constant 0 : index
    %10 = vector.load %arg5[%c0_8, %c0_9] : memref<32x32xbf16, #tpu.memory_space<vmem>>, vector<32x32xbf16>
    %cst_10 = arith.constant dense<0.000000e+00> : vector<32x128xf32>
    %11 = tpu.matmul %10, %9, %cst_10 {dimension_numbers = #tpu.dot_dimension_numbers<[1], [0], [0], [1], [0, 0, 1, 1], [], []>} : vector<32x32xbf16>, vector<32x128xbf16>, vector<32x128xf32> -> vector<32x128xf32>
    %c0_11 = arith.constant 0 : index
    %c0_12 = arith.constant 0 : index
    %12 = vector.load %arg6[%c0_11, %c0_12] : memref<32x1xf32, #tpu.memory_space<vmem>>, vector<32x1xf32>
    %13 = vector.broadcast %12 : vector<32x1xf32> to vector<32x128xf32>
    %14 = arith.addf %11, %13 : vector<32x128xf32>
    %cst_13 = arith.constant 0.000000e+00 : f32
    %15 = vector.broadcast %cst_13 : f32 to vector<32x128xf32>
    %16 = arith.maximumf %14, %15 : vector<32x128xf32>
    %17 = arith.truncf %16 : vector<32x128xf32> to vector<32x128xbf16>
    %c0_14 = arith.constant 0 : index
    %c0_15 = arith.constant 0 : index
    %18 = vector.load %arg7[%c0_14, %c0_15] : memref<32x32xbf16, #tpu.memory_space<vmem>>, vector<32x32xbf16>
    %cst_16 = arith.constant dense<0.000000e+00> : vector<32x128xf32>
    %19 = tpu.matmul %18, %17, %cst_16 {dimension_numbers = #tpu.dot_dimension_numbers<[1], [0], [0], [1], [0, 0, 1, 1], [], []>} : vector<32x32xbf16>, vector<32x128xbf16>, vector<32x128xf32> -> vector<32x128xf32>
    %c0_17 = arith.constant 0 : index
    %c0_18 = arith.constant 0 : index
    %20 = vector.load %arg8[%c0_17, %c0_18] : memref<32x1xf32, #tpu.memory_space<vmem>>, vector<32x1xf32>
    %21 = vector.broadcast %20 : vector<32x1xf32> to vector<32x128xf32>
    %22 = arith.addf %19, %21 : vector<32x128xf32>
    %cst_19 = arith.constant 0.000000e+00 : f32
    %23 = vector.broadcast %cst_19 : f32 to vector<32x128xf32>
    %24 = arith.maximumf %22, %23 : vector<32x128xf32>
    %25 = arith.truncf %24 : vector<32x128xf32> to vector<32x128xbf16>
    %c0_20 = arith.constant 0 : index
    %c0_21 = arith.constant 0 : index
    %26 = vector.load %arg9[%c0_20, %c0_21] : memref<64x32xbf16, #tpu.memory_space<vmem>>, vector<64x32xbf16>
    %cst_22 = arith.constant dense<0.000000e+00> : vector<64x128xf32>
    %27 = tpu.matmul %26, %25, %cst_22 {dimension_numbers = #tpu.dot_dimension_numbers<[1], [0], [0], [1], [0, 0, 1, 1], [], []>} : vector<64x32xbf16>, vector<32x128xbf16>, vector<64x128xf32> -> vector<64x128xf32>
    %c0_23 = arith.constant 0 : index
    %c0_24 = arith.constant 0 : index
    %28 = vector.load %arg10[%c0_23, %c0_24] : memref<64x1xf32, #tpu.memory_space<vmem>>, vector<64x1xf32>
    %29 = vector.broadcast %28 : vector<64x1xf32> to vector<64x128xf32>
    %30 = arith.addf %27, %29 : vector<64x128xf32>
    %31 = vector.extract_strided_slice %30 {offsets = [0, 0], sizes = [32, 128], strides = [1, 1]} : vector<64x128xf32> to vector<32x128xf32>
    %c1_i32 = arith.constant 1 : i32
    %32 = vector.broadcast %c1_i32 : i32 to vector<1x128xi32>
    %33 = arith.cmpi eq, %0, %32 : vector<1x128xi32>
    %34 = vector.extract_strided_slice %30 {offsets = [32, 0], sizes = [32, 128], strides = [1, 1]} : vector<64x128xf32> to vector<32x128xf32>
    %35 = vector.shape_cast %33 : vector<1x128xi1> to vector<1x128xi1>
    %36 = vector.broadcast %35 : vector<1x128xi1> to vector<32x128xi1>
    %37 = arith.select %36, %34, %31 : vector<32x128xi1>, vector<32x128xf32>
    %38 = arith.truncf %37 : vector<32x128xf32> to vector<32x128xbf16>
    %c0_25 = arith.constant 0 : index
    %c0_26 = arith.constant 0 : index
    %39 = vector.load %arg11[%c0_25, %c0_26] : memref<32x32xbf16, #tpu.memory_space<vmem>>, vector<32x32xbf16>
    %cst_27 = arith.constant dense<0.000000e+00> : vector<32x128xf32>
    %40 = tpu.matmul %39, %38, %cst_27 {dimension_numbers = #tpu.dot_dimension_numbers<[1], [0], [0], [1], [0, 0, 1, 1], [], []>} : vector<32x32xbf16>, vector<32x128xbf16>, vector<32x128xf32> -> vector<32x128xf32>
    %c0_28 = arith.constant 0 : index
    %c0_29 = arith.constant 0 : index
    %41 = vector.load %arg12[%c0_28, %c0_29] : memref<32x1xf32, #tpu.memory_space<vmem>>, vector<32x1xf32>
    %42 = vector.broadcast %41 : vector<32x1xf32> to vector<32x128xf32>
    %43 = arith.addf %40, %42 : vector<32x128xf32>
    %cst_30 = arith.constant 0.000000e+00 : f32
    %44 = vector.broadcast %cst_30 : f32 to vector<32x128xf32>
    %45 = arith.maximumf %43, %44 : vector<32x128xf32>
    %46 = arith.truncf %45 : vector<32x128xf32> to vector<32x128xbf16>
    %c0_31 = arith.constant 0 : index
    %c0_32 = arith.constant 0 : index
    %47 = vector.load %arg13[%c0_31, %c0_32] : memref<32x32xbf16, #tpu.memory_space<vmem>>, vector<32x32xbf16>
    %cst_33 = arith.constant dense<0.000000e+00> : vector<32x128xf32>
    %48 = tpu.matmul %47, %46, %cst_33 {dimension_numbers = #tpu.dot_dimension_numbers<[1], [0], [0], [1], [0, 0, 1, 1], [], []>} : vector<32x32xbf16>, vector<32x128xbf16>, vector<32x128xf32> -> vector<32x128xf32>
    %c0_34 = arith.constant 0 : index
    %c0_35 = arith.constant 0 : index
    %49 = vector.load %arg14[%c0_34, %c0_35] : memref<32x1xf32, #tpu.memory_space<vmem>>, vector<32x1xf32>
    %50 = vector.broadcast %49 : vector<32x1xf32> to vector<32x128xf32>
    %51 = arith.addf %48, %50 : vector<32x128xf32>
    %cst_36 = arith.constant 0.000000e+00 : f32
    %52 = vector.broadcast %cst_36 : f32 to vector<32x128xf32>
    %53 = arith.maximumf %51, %52 : vector<32x128xf32>
    %54 = arith.truncf %53 : vector<32x128xf32> to vector<32x128xbf16>
    %c0_37 = arith.constant 0 : index
    %c0_38 = arith.constant 0 : index
    %55 = vector.load %arg15[%c0_37, %c0_38] : memref<64x32xbf16, #tpu.memory_space<vmem>>, vector<64x32xbf16>
    %cst_39 = arith.constant dense<0.000000e+00> : vector<64x128xf32>
    %56 = tpu.matmul %55, %54, %cst_39 {dimension_numbers = #tpu.dot_dimension_numbers<[1], [0], [0], [1], [0, 0, 1, 1], [], []>} : vector<64x32xbf16>, vector<32x128xbf16>, vector<64x128xf32> -> vector<64x128xf32>
    %c0_40 = arith.constant 0 : index
    %c0_41 = arith.constant 0 : index
    %57 = vector.load %arg16[%c0_40, %c0_41] : memref<64x1xf32, #tpu.memory_space<vmem>>, vector<64x1xf32>
    %58 = vector.broadcast %57 : vector<64x1xf32> to vector<64x128xf32>
    %59 = arith.addf %56, %58 : vector<64x128xf32>
    %60 = vector.extract_strided_slice %59 {offsets = [0, 0], sizes = [32, 128], strides = [1, 1]} : vector<64x128xf32> to vector<32x128xf32>
    %c1_i32_42 = arith.constant 1 : i32
    %61 = vector.broadcast %c1_i32_42 : i32 to vector<1x128xi32>
    %62 = arith.cmpi eq, %0, %61 : vector<1x128xi32>
    %63 = vector.extract_strided_slice %59 {offsets = [32, 0], sizes = [32, 128], strides = [1, 1]} : vector<64x128xf32> to vector<32x128xf32>
    %64 = vector.shape_cast %62 : vector<1x128xi1> to vector<1x128xi1>
    %65 = vector.broadcast %64 : vector<1x128xi1> to vector<32x128xi1>
    %66 = arith.select %65, %63, %60 : vector<32x128xi1>, vector<32x128xf32>
    %cst_43 = arith.constant 0.000000e+00 : f32
    %67 = vector.broadcast %cst_43 : f32 to vector<32x128xf32>
    %68 = arith.maximumf %66, %67 : vector<32x128xf32>
    %69 = arith.truncf %68 : vector<32x128xf32> to vector<32x128xbf16>
    %c0_44 = arith.constant 0 : index
    %c0_45 = arith.constant 0 : index
    %70 = vector.load %arg17[%c0_44, %c0_45] : memref<128x32xbf16, #tpu.memory_space<vmem>>, vector<128x32xbf16>
    %cst_46 = arith.constant dense<0.000000e+00> : vector<128x128xf32>
    %71 = tpu.matmul %70, %69, %cst_46 {dimension_numbers = #tpu.dot_dimension_numbers<[1], [0], [0], [1], [0, 0, 1, 1], [], []>} : vector<128x32xbf16>, vector<32x128xbf16>, vector<128x128xf32> -> vector<128x128xf32>
    %c0_47 = arith.constant 0 : index
    %c0_48 = arith.constant 0 : index
    %72 = vector.load %arg18[%c0_47, %c0_48] : memref<128x1xf32, #tpu.memory_space<vmem>>, vector<128x1xf32>
    %73 = vector.broadcast %72 : vector<128x1xf32> to vector<128x128xf32>
    %74 = arith.addf %71, %73 : vector<128x128xf32>
    %75 = vector.extract_strided_slice %74 {offsets = [0, 0], sizes = [64, 128], strides = [1, 1]} : vector<128x128xf32> to vector<64x128xf32>
    %c1_i32_49 = arith.constant 1 : i32
    %76 = vector.broadcast %c1_i32_49 : i32 to vector<1x128xi32>
    %77 = arith.cmpi eq, %0, %76 : vector<1x128xi32>
    %78 = vector.extract_strided_slice %74 {offsets = [64, 0], sizes = [64, 128], strides = [1, 1]} : vector<128x128xf32> to vector<64x128xf32>
    %79 = vector.shape_cast %77 : vector<1x128xi1> to vector<1x128xi1>
    %80 = vector.broadcast %79 : vector<1x128xi1> to vector<64x128xi1>
    %81 = arith.select %80, %78, %75 : vector<64x128xi1>, vector<64x128xf32>
    %82 = arith.truncf %81 : vector<64x128xf32> to vector<64x128xbf16>
    %c0_50 = arith.constant 0 : index
    %c0_51 = arith.constant 0 : index
    %83 = vector.load %arg19[%c0_50, %c0_51] : memref<2x64xbf16, #tpu.memory_space<vmem>>, vector<2x64xbf16>
    %cst_52 = arith.constant dense<0.000000e+00> : vector<2x128xf32>
    %84 = tpu.matmul %83, %82, %cst_52 {dimension_numbers = #tpu.dot_dimension_numbers<[1], [0], [0], [1], [0, 0, 1, 1], [], []>} : vector<2x64xbf16>, vector<64x128xbf16>, vector<2x128xf32> -> vector<2x128xf32>
    %c0_53 = arith.constant 0 : index
    %c0_54 = arith.constant 0 : index
    %85 = vector.load %arg20[%c0_53, %c0_54] : memref<2x1xf32, #tpu.memory_space<vmem>>, vector<2x1xf32>
    %86 = vector.broadcast %85 : vector<2x1xf32> to vector<2x128xf32>
    %87 = arith.addf %84, %86 : vector<2x128xf32>
    %88 = vector.extract_strided_slice %87 {offsets = [0, 0], sizes = [1, 128], strides = [1, 1]} : vector<2x128xf32> to vector<1x128xf32>
    %c1_i32_55 = arith.constant 1 : i32
    %89 = vector.broadcast %c1_i32_55 : i32 to vector<1x128xi32>
    %90 = arith.cmpi eq, %0, %89 : vector<1x128xi32>
    %91 = vector.extract_strided_slice %87 {offsets = [1, 0], sizes = [1, 128], strides = [1, 1]} : vector<2x128xf32> to vector<1x128xf32>
    %92 = arith.select %90, %91, %88 : vector<1x128xi1>, vector<1x128xf32>
    %93 = arith.negf %92 : vector<1x128xf32>
    %94 = math.exp %93 : vector<1x128xf32>
    %cst_56 = arith.constant 1.000000e+00 : f32
    %95 = vector.broadcast %cst_56 : f32 to vector<1x128xf32>
    %96 = arith.addf %95, %94 : vector<1x128xf32>
    %97 = arith.divf %95, %96 : vector<1x128xf32>
    %c0_57 = arith.constant 0 : index
    %c0_58 = arith.constant 0 : index
    %98 = vector.load %arg21[%c0_57, %c0_58] : memref<1x128xf32, #tpu.memory_space<vmem>>, vector<1x128xf32>
    tpu.vector_store %arg21[%c0_57, %c0_58], %97 {strides = array<i32>} : memref<1x128xf32, #tpu.memory_space<vmem>>, vector<1x128xf32>,
    return
  }
  func.func @transform_0(%arg0: i32) -> (i32, i32) {
    %c0_i32 = arith.constant 0 : i32
    %c0_i32_0 = arith.constant 0 : i32
    return %c0_i32, %arg0 : i32, i32
  }
  func.func @transform_1(%arg0: i32) -> (i32, i32) {
    %c0_i32 = arith.constant 0 : i32
    %c0_i32_0 = arith.constant 0 : i32
    return %c0_i32, %arg0 : i32, i32
  }
  func.func @transform_2(%arg0: i32) -> (i32, i32) {
    %c0_i32 = arith.constant 0 : i32
    %c0_i32_0 = arith.constant 0 : i32
    %c0_i32_1 = arith.constant 0 : i32
    return %c0_i32, %c0_i32_0 : i32, i32
  }
  func.func @transform_3(%arg0: i32) -> (i32, i32) {
    %c0_i32 = arith.constant 0 : i32
    %c0_i32_0 = arith.constant 0 : i32
    %c0_i32_1 = arith.constant 0 : i32
    return %c0_i32, %c0_i32_0 : i32, i32
  }
  func.func @transform_4(%arg0: i32) -> (i32, i32) {
    %c0_i32 = arith.constant 0 : i32
    %c0_i32_0 = arith.constant 0 : i32
    %c0_i32_1 = arith.constant 0 : i32
    return %c0_i32, %c0_i32_0 : i32, i32
  }
  func.func @transform_5(%arg0: i32) -> (i32, i32) {
    %c0_i32 = arith.constant 0 : i32
    %c0_i32_0 = arith.constant 0 : i32
    %c0_i32_1 = arith.constant 0 : i32
    return %c0_i32, %c0_i32_0 : i32, i32
  }
  func.func @transform_6(%arg0: i32) -> (i32, i32) {
    %c0_i32 = arith.constant 0 : i32
    %c0_i32_0 = arith.constant 0 : i32
    %c0_i32_1 = arith.constant 0 : i32
    return %c0_i32, %c0_i32_0 : i32, i32
  }
  func.func @transform_7(%arg0: i32) -> (i32, i32) {
    %c0_i32 = arith.constant 0 : i32
    %c0_i32_0 = arith.constant 0 : i32
    %c0_i32_1 = arith.constant 0 : i32
    return %c0_i32, %c0_i32_0 : i32, i32
  }
  func.func @transform_8(%arg0: i32) -> (i32, i32) {
    %c0_i32 = arith.constant 0 : i32
    %c0_i32_0 = arith.constant 0 : i32
    %c0_i32_1 = arith.constant 0 : i32
    return %c0_i32, %c0_i32_0 : i32, i32
  }
  func.func @transform_9(%arg0: i32) -> (i32, i32) {
    %c0_i32 = arith.constant 0 : i32
    %c0_i32_0 = arith.constant 0 : i32
    %c0_i32_1 = arith.constant 0 : i32
    return %c0_i32, %c0_i32_0 : i32, i32
  }
  func.func @transform_10(%arg0: i32) -> (i32, i32) {
    %c0_i32 = arith.constant 0 : i32
    %c0_i32_0 = arith.constant 0 : i32
    %c0_i32_1 = arith.constant 0 : i32
    return %c0_i32, %c0_i32_0 : i32, i32
  }
  func.func @transform_11(%arg0: i32) -> (i32, i32) {
    %c0_i32 = arith.constant 0 : i32
    %c0_i32_0 = arith.constant 0 : i32
    %c0_i32_1 = arith.constant 0 : i32
    return %c0_i32, %c0_i32_0 : i32, i32
  }
  func.func @transform_12(%arg0: i32) -> (i32, i32) {
    %c0_i32 = arith.constant 0 : i32
    %c0_i32_0 = arith.constant 0 : i32
    %c0_i32_1 = arith.constant 0 : i32
    return %c0_i32, %c0_i32_0 : i32, i32
  }
  func.func @transform_13(%arg0: i32) -> (i32, i32) {
    %c0_i32 = arith.constant 0 : i32
    %c0_i32_0 = arith.constant 0 : i32
    %c0_i32_1 = arith.constant 0 : i32
    return %c0_i32, %c0_i32_0 : i32, i32
  }
  func.func @transform_14(%arg0: i32) -> (i32, i32) {
    %c0_i32 = arith.constant 0 : i32
    %c0_i32_0 = arith.constant 0 : i32
    %c0_i32_1 = arith.constant 0 : i32
    return %c0_i32, %c0_i32_0 : i32, i32
  }
  func.func @transform_15(%arg0: i32) -> (i32, i32) {
    %c0_i32 = arith.constant 0 : i32
    %c0_i32_0 = arith.constant 0 : i32
    %c0_i32_1 = arith.constant 0 : i32
    return %c0_i32, %c0_i32_0 : i32, i32
  }
  func.func @transform_16(%arg0: i32) -> (i32, i32) {
    %c0_i32 = arith.constant 0 : i32
    %c0_i32_0 = arith.constant 0 : i32
    %c0_i32_1 = arith.constant 0 : i32
    return %c0_i32, %c0_i32_0 : i32, i32
  }
  func.func @transform_17(%arg0: i32) -> (i32, i32) {
    %c0_i32 = arith.constant 0 : i32
    %c0_i32_0 = arith.constant 0 : i32
    %c0_i32_1 = arith.constant 0 : i32
    return %c0_i32, %c0_i32_0 : i32, i32
  }
  func.func @transform_18(%arg0: i32) -> (i32, i32) {
    %c0_i32 = arith.constant 0 : i32
    %c0_i32_0 = arith.constant 0 : i32
    %c0_i32_1 = arith.constant 0 : i32
    return %c0_i32, %c0_i32_0 : i32, i32
  }
  func.func @transform_19(%arg0: i32) -> (i32, i32) {
    %c0_i32 = arith.constant 0 : i32
    %c0_i32_0 = arith.constant 0 : i32
    %c0_i32_1 = arith.constant 0 : i32
    return %c0_i32, %c0_i32_0 : i32, i32
  }
  func.func @transform_20(%arg0: i32) -> (i32, i32) {
    %c0_i32 = arith.constant 0 : i32
    %c0_i32_0 = arith.constant 0 : i32
    return %c0_i32, %arg0 : i32, i32
  }
}

</mosaic_0001>

<llo_original>
// kernel: fused_mlp_forward.1
$region0: #{fused_mlp_forward.1}
  #allocation0 [shape = 'u32[]', space=smem, size = 0x4, offset = 0x4, fixed_abs, tag = 'smem constant byte address 0x4 - core index']
  #allocation1 [shape = 'u32[144,128]{1,0:T(1,128)}', space=vmem, size = 0x12000, scoped, tag = 'internal scratch']
  %s0 = inlined_call_operand.vmem [shape: s32[1,128], index: 0, kind: input, shape index: {}]
  %s1 = inlined_call_operand.vmem [shape: bf16[16,128], index: 1, kind: input, shape index: {}]
  %s2 = inlined_call_operand.vmem [shape: bf16[32,16], index: 2, kind: input, shape index: {}]
  %s3 = inlined_call_operand.vmem [shape: f32[32,1], index: 3, kind: input, shape index: {}]
  %s4 = inlined_call_operand.vmem [shape: bf16[32,32], index: 4, kind: input, shape index: {}]
  %s5 = inlined_call_operand.vmem [shape: f32[32,1], index: 5, kind: input, shape index: {}]
  %s6 = inlined_call_operand.vmem [shape: bf16[32,32], index: 6, kind: input, shape index: {}]
  %s7 = inlined_call_operand.vmem [shape: f32[32,1], index: 7, kind: input, shape index: {}]
  %s8 = inlined_call_operand.vmem [shape: bf16[64,32], index: 8, kind: input, shape index: {}]
  %s9 = inlined_call_operand.vmem [shape: f32[64,1], index: 9, kind: input, shape index: {}]
  %s10 = inlined_call_operand.vmem [shape: bf16[32,32], index: 10, kind: input, shape index: {}]
  %s11 = inlined_call_operand.vmem [shape: f32[32,1], index: 11, kind: input, shape index: {}]
  %s12 = inlined_call_operand.vmem [shape: bf16[32,32], index: 12, kind: input, shape index: {}]
  %s13 = inlined_call_operand.vmem [shape: f32[32,1], index: 13, kind: input, shape index: {}]
  %s14 = inlined_call_operand.vmem [shape: bf16[64,32], index: 14, kind: input, shape index: {}]
  %s15 = inlined_call_operand.vmem [shape: f32[64,1], index: 15, kind: input, shape index: {}]
  %s16 = inlined_call_operand.vmem [shape: bf16[128,32], index: 16, kind: input, shape index: {}]
  %s17 = inlined_call_operand.vmem [shape: f32[128,1], index: 17, kind: input, shape index: {}]
  %s18 = inlined_call_operand.vmem [shape: bf16[2,64], index: 18, kind: input, shape index: {}]
  %s19 = inlined_call_operand.vmem [shape: f32[2,1], index: 19, kind: input, shape index: {}]
  %s20 = inlined_call_operand.vmem [shape: f32[1,128], index: 20, kind: output, shape index: {}]
  %s21 = sld [smem:[#allocation0]]
  $region90: #{fused_mlp_forward.1} parent=0
    _
  %s23 = ssub.s32 1, %s21
  %s24 = scalar_select 0, %s23, %s21
  // Predicated region
  $region2: #{fused_mlp_forward.1} parent=0 // pred_check
    _
  $region3: #{fused_mlp_forward.1} parent=0 // pred_check_branch
    %26 = sbr.rel (0) target = $region5
  $region4: #{fused_mlp_forward.1} parent=0 // pred_region
    _
  $region5: #{fused_mlp_forward.1} parent=0 // pred_fallthru
    _
  // Predicated region
  $region6: #{fused_mlp_forward.1} parent=0 // pred_check
    _
  $region7: #{fused_mlp_forward.1} parent=0 // pred_check_branch
    %28 = sbr.rel (0) target = $region9
  $region8: #{fused_mlp_forward.1} parent=0 // pred_region
    _
  $region9: #{fused_mlp_forward.1} parent=0 // pred_fallthru
    _
  // Predicated region
  $region10: #{fused_mlp_forward.1} parent=0 // pred_check
    _
  $region11: #{fused_mlp_forward.1} parent=0 // pred_check_branch
    %30 = sbr.rel (0) target = $region13
  $region12: #{fused_mlp_forward.1} parent=0 // pred_region
    _
  $region13: #{fused_mlp_forward.1} parent=0 // pred_fallthru
    _
  // Predicated region
  $region14: #{fused_mlp_forward.1} parent=0 // pred_check
    _
  $region15: #{fused_mlp_forward.1} parent=0 // pred_check_branch
    %32 = sbr.rel (0) target = $region17
  $region16: #{fused_mlp_forward.1} parent=0 // pred_region
    _
  $region17: #{fused_mlp_forward.1} parent=0 // pred_fallthru
    _
  // Predicated region
  $region18: #{fused_mlp_forward.1} parent=0 // pred_check
    _
  $region19: #{fused_mlp_forward.1} parent=0 // pred_check_branch
    %34 = sbr.rel (0) target = $region21
  $region20: #{fused_mlp_forward.1} parent=0 // pred_region
    _
  $region21: #{fused_mlp_forward.1} parent=0 // pred_fallthru
    _
  // Predicated region
  $region22: #{fused_mlp_forward.1} parent=0 // pred_check
    _
  $region23: #{fused_mlp_forward.1} parent=0 // pred_check_branch
    %36 = sbr.rel (0) target = $region25
  $region24: #{fused_mlp_forward.1} parent=0 // pred_region
    _
  $region25: #{fused_mlp_forward.1} parent=0 // pred_fallthru
    _
  // Predicated region
  $region26: #{fused_mlp_forward.1} parent=0 // pred_check
    _
  $region27: #{fused_mlp_forward.1} parent=0 // pred_check_branch
    %38 = sbr.rel (0) target = $region29
  $region28: #{fused_mlp_forward.1} parent=0 // pred_region
    _
  $region29: #{fused_mlp_forward.1} parent=0 // pred_fallthru
    _
  // Predicated region
  $region30: #{fused_mlp_forward.1} parent=0 // pred_check
    _
  $region31: #{fused_mlp_forward.1} parent=0 // pred_check_branch
    %40 = sbr.rel (0) target = $region33
  $region32: #{fused_mlp_forward.1} parent=0 // pred_region
    _
  $region33: #{fused_mlp_forward.1} parent=0 // pred_fallthru
    _
  // Predicated region
  $region34: #{fused_mlp_forward.1} parent=0 // pred_check
    _
  $region35: #{fused_mlp_forward.1} parent=0 // pred_check_branch
    %42 = sbr.rel (0) target = $region37
  $region36: #{fused_mlp_forward.1} parent=0 // pred_region
    _
  $region37: #{fused_mlp_forward.1} parent=0 // pred_fallthru
    _
  // Predicated region
  $region38: #{fused_mlp_forward.1} parent=0 // pred_check
    _
  $region39: #{fused_mlp_forward.1} parent=0 // pred_check_branch
    %44 = sbr.rel (0) target = $region41
  $region40: #{fused_mlp_forward.1} parent=0 // pred_region
    _
  $region41: #{fused_mlp_forward.1} parent=0 // pred_fallthru
    _
  // Predicated region
  $region42: #{fused_mlp_forward.1} parent=0 // pred_check
    _
  $region43: #{fused_mlp_forward.1} parent=0 // pred_check_branch
    %46 = sbr.rel (0) target = $region45
  $region44: #{fused_mlp_forward.1} parent=0 // pred_region
    _
  $region45: #{fused_mlp_forward.1} parent=0 // pred_fallthru
    _
  // Predicated region
  $region46: #{fused_mlp_forward.1} parent=0 // pred_check
    _
  $region47: #{fused_mlp_forward.1} parent=0 // pred_check_branch
    %48 = sbr.rel (0) target = $region49
  $region48: #{fused_mlp_forward.1} parent=0 // pred_region
    _
  $region49: #{fused_mlp_forward.1} parent=0 // pred_fallthru
    _
  // Predicated region
  $region50: #{fused_mlp_forward.1} parent=0 // pred_check
    _
  $region51: #{fused_mlp_forward.1} parent=0 // pred_check_branch
    %50 = sbr.rel (0) target = $region53
  $region52: #{fused_mlp_forward.1} parent=0 // pred_region
    _
  $region53: #{fused_mlp_forward.1} parent=0 // pred_fallthru
    _
  // Predicated region
  $region54: #{fused_mlp_forward.1} parent=0 // pred_check
    _
  $region55: #{fused_mlp_forward.1} parent=0 // pred_check_branch
    %52 = sbr.rel (0) target = $region57
  $region56: #{fused_mlp_forward.1} parent=0 // pred_region
    _
  $region57: #{fused_mlp_forward.1} parent=0 // pred_fallthru
    _
  // Predicated region
  $region58: #{fused_mlp_forward.1} parent=0 // pred_check
    _
  $region59: #{fused_mlp_forward.1} parent=0 // pred_check_branch
    %54 = sbr.rel (0) target = $region61
  $region60: #{fused_mlp_forward.1} parent=0 // pred_region
    _
  $region61: #{fused_mlp_forward.1} parent=0 // pred_fallthru
    _
  // Predicated region
  $region62: #{fused_mlp_forward.1} parent=0 // pred_check
    _
  $region63: #{fused_mlp_forward.1} parent=0 // pred_check_branch
    %56 = sbr.rel (0) target = $region65
  $region64: #{fused_mlp_forward.1} parent=0 // pred_region
    _
  $region65: #{fused_mlp_forward.1} parent=0 // pred_fallthru
    _
  // Predicated region
  $region66: #{fused_mlp_forward.1} parent=0 // pred_check
    _
  $region67: #{fused_mlp_forward.1} parent=0 // pred_check_branch
    %58 = sbr.rel (0) target = $region69
  $region68: #{fused_mlp_forward.1} parent=0 // pred_region
    _
  $region69: #{fused_mlp_forward.1} parent=0 // pred_fallthru
    _
  // Predicated region
  $region70: #{fused_mlp_forward.1} parent=0 // pred_check
    _
  $region71: #{fused_mlp_forward.1} parent=0 // pred_check_branch
    %60 = sbr.rel (0) target = $region73
  $region72: #{fused_mlp_forward.1} parent=0 // pred_region
    _
  $region73: #{fused_mlp_forward.1} parent=0 // pred_fallthru
    _
  // Predicated region
  $region74: #{fused_mlp_forward.1} parent=0 // pred_check
    _
  $region75: #{fused_mlp_forward.1} parent=0 // pred_check_branch
    %62 = sbr.rel (0) target = $region77
  $region76: #{fused_mlp_forward.1} parent=0 // pred_region
    _
  $region77: #{fused_mlp_forward.1} parent=0 // pred_fallthru
    _
  // Predicated region
  $region78: #{fused_mlp_forward.1} parent=0 // pred_check
    _
  $region79: #{fused_mlp_forward.1} parent=0 // pred_check_branch
    %64 = sbr.rel (0) target = $region81
  $region80: #{fused_mlp_forward.1} parent=0 // pred_region
    _
  $region81: #{fused_mlp_forward.1} parent=0 // pred_fallthru
    _
  %v66 = vld [vmem:[%s0] sm:$0x1]
  %v67 = vld [vmem:[%s1] sm:$0xf]
  %v68 = vld [vmem:[%s1 + $0x4] sm:$0xf]
  %v69 = vld [vmem:[%s2] sm:$0xf]
  %v70 = vld [vmem:[%s2 + $0x4] sm:$0xf]
  %v71 = vld [vmem:[%s2 + $0x8] sm:$0xf]
  %v72 = vld [vmem:[%s2 + $0xc] sm:$0xf]
  %v73 = vld [vmem:[%s3] sm:$0xff]
  %v74 = vld [vmem:[%s3 + $0x8] sm:$0xff]
  %v75 = vld [vmem:[%s3 + $0x10] sm:$0xff]
  %v76 = vld [vmem:[%s3 + $0x18] sm:$0xff]
  %78 = vset.pattern.permute.xlu0 0
  %79 = vperm.xlu0 %78, %v73
  %v80 = vpop.permute.xlu0 %79
  %83 = vset.pattern.permute.xlu0 0
  %84 = vperm.xlu0 %83, %v74
  %v85 = vpop.permute.xlu0 %84
  %88 = vset.pattern.permute.xlu0 0
  %89 = vperm.xlu0 %88, %v75
  %v90 = vpop.permute.xlu0 %89
  %93 = vset.pattern.permute.xlu0 0
  %94 = vperm.xlu0 %93, %v76
  %v95 = vpop.permute.xlu0 %94
  %v101 = vunpack.c.l.b16 %v69
  %v102 = vunpack.c.l.b16 %v70
  %v103 = vunpack.c.l.b16 %v71
  %v104 = vunpack.c.l.b16 %v72
  %v105 = vpack.c.b16 %v102, %v101
  %v106 = vpack.c.b16 %v104, %v103
  %v109 = vunpack.c.l.b16 %v67
  %v110 = vunpack.c.l.b16 %v68
  %v111 = vpack.c.b16 %v110, %v109
  %vm113 = vcmask 130048
  %v115 = vsel %vm113, %v105, 0
  %v118 = vsel %vm113, %v106, 0
  %120 = vmatprep.subr.bf16.mxu0 0
  %121 = vmatpush1.bf16.msra.mxu0 %v111
  %122 = vmatprep.subr.bf16.mxu0 0
  %123 = vmatpush1.bf16.msra.mxu0 0
  %124 = vmatprep.subr.bf16.mxu0 0
  %125 = vmatpush1.bf16.msra.mxu0 0
  %126 = vmatprep.subr.bf16.mxu0 0
  %127 = vmatpush1.bf16.msra.mxu0 0
  %128 = vmatprep.subr.bf16.mxu0 0
  %129 = vmatpush1.bf16.msra.mxu0 0
  %130 = vmatprep.subr.bf16.mxu0 0
  %131 = vmatpush1.bf16.msra.mxu0 0
  %132 = vmatprep.subr.bf16.mxu0 0
  %133 = vmatpush1.bf16.msra.mxu0 0
  %134 = vmatprep.subr.bf16.mxu0 0
  %135 = vmatpush1.bf16.msra.mxu0 0
  %136 = vmatprep.subr.bf16.mxu0 0
  %137 = vmatpush1.bf16.msra.mxu0 0
  %138 = vmatprep.subr.bf16.mxu0 0
  %139 = vmatpush1.bf16.msra.mxu0 0
  %140 = vmatprep.subr.bf16.mxu0 0
  %141 = vmatpush1.bf16.msra.mxu0 0
  %142 = vmatprep.subr.bf16.mxu0 0
  %143 = vmatpush1.bf16.msra.mxu0 0
  %144 = vmatprep.subr.bf16.mxu0 0
  %145 = vmatpush1.bf16.msra.mxu0 0
  %146 = vmatprep.subr.bf16.mxu0 0
  %147 = vmatpush1.bf16.msra.mxu0 0
  %148 = vmatprep.subr.bf16.mxu0 0
  %149 = vmatpush1.bf16.msra.mxu0 0
  %150 = vmatprep.subr.bf16.mxu0 0
  %151 = vmatpush1.bf16.msra.mxu0 0
  %152 = vmatprep.mubr.bf16.mxu0 0
  %153 = vmatmul.mubr.bf16.gmra.mrb[0].mxu0 %v115
  %v154 = vpop.f32.mrb[0].mxu0
  %v155 = vadd.f32 %v80, %v154
  %v156 = vpop.f32.mrb[0].mxu0
  %v157 = vpop.f32.mrb[0].mxu0
  %v158 = vadd.f32 %v85, %v157
  %v159 = vpop.f32.mrb[0].mxu0
  %160 = vmatprep.mubr.bf16.mxu0 0
  %161 = vmatmul.mubr.bf16.gmra.mrb[0].mxu0 %v118
  %v162 = vpop.f32.mrb[0].mxu0
  %v163 = vadd.f32 %v90, %v162
  %v164 = vpop.f32.mrb[0].mxu0
  %v165 = vpop.f32.mrb[0].mxu0
  %v166 = vadd.f32 %v95, %v165
  %v167 = vpop.f32.mrb[0].mxu0
  %168 = vdwg.mxu0
  %v169 = vmax.f32 %v155, 0.0
  %v170 = vmax.f32 %v158, 0.0
  %v171 = vmax.f32 %v163, 0.0
  %v172 = vmax.f32 %v166, 0.0
  %v173 = vpack.c.bf16 %v170, %v169
  %v174 = vpack.c.bf16 %v172, %v171
  %v175 = vld [vmem:[%s4] sm:$0xf]
  %v176 = vld [vmem:[%s4 + $0x4] sm:$0xf]
  %v177 = vld [vmem:[%s4 + $0x8] sm:$0xf]
  %v178 = vld [vmem:[%s4 + $0xc] sm:$0xf]
  %v179 = vld [vmem:[%s5] sm:$0xff]
  %v180 = vld [vmem:[%s5 + $0x8] sm:$0xff]
  %v181 = vld [vmem:[%s5 + $0x10] sm:$0xff]
  %v182 = vld [vmem:[%s5 + $0x18] sm:$0xff]
  %184 = vset.pattern.permute.xlu0 0
  %185 = vperm.xlu0 %184, %v179
  %v186 = vpop.permute.xlu0 %185
  %189 = vset.pattern.permute.xlu0 0
  %190 = vperm.xlu0 %189, %v180
  %v191 = vpop.permute.xlu0 %190
  %194 = vset.pattern.permute.xlu0 0
  %195 = vperm.xlu0 %194, %v181
  %v196 = vpop.permute.xlu0 %195
  %199 = vset.pattern.permute.xlu0 0
  %200 = vperm.xlu0 %199, %v182
  %v201 = vpop.permute.xlu0 %200
  %v207 = vunpack.c.l.b16 %v175
  %v208 = vunpack.c.l.b16 %v176
  %v209 = vunpack.c.l.b16 %v177
  %v210 = vunpack.c.l.b16 %v178
  %v211 = vpack.c.b16 %v208, %v207
  %v212 = vpack.c.b16 %v210, %v209
  %vm213 = vcmask 261120
  %v215 = vsel %vm213, %v211, 0
  %v218 = vsel %vm213, %v212, 0
  %220 = vmatprep.subr.bf16.mxu0 0
  %221 = vmatpush1.bf16.msra.mxu0 %v173
  %222 = vmatprep.subr.bf16.mxu0 0
  %223 = vmatpush1.bf16.msra.mxu0 %v174
  %224 = vmatprep.subr.bf16.mxu0 0
  %225 = vmatpush1.bf16.msra.mxu0 0
  %226 = vmatprep.subr.bf16.mxu0 0
  %227 = vmatpush1.bf16.msra.mxu0 0
  %228 = vmatprep.subr.bf16.mxu0 0
  %229 = vmatpush1.bf16.msra.mxu0 0
  %230 = vmatprep.subr.bf16.mxu0 0
  %231 = vmatpush1.bf16.msra.mxu0 0
  %232 = vmatprep.subr.bf16.mxu0 0
  %233 = vmatpush1.bf16.msra.mxu0 0
  %234 = vmatprep.subr.bf16.mxu0 0
  %235 = vmatpush1.bf16.msra.mxu0 0
  %236 = vmatprep.subr.bf16.mxu0 0
  %237 = vmatpush1.bf16.msra.mxu0 0
  %238 = vmatprep.subr.bf16.mxu0 0
  %239 = vmatpush1.bf16.msra.mxu0 0
  %240 = vmatprep.subr.bf16.mxu0 0
  %241 = vmatpush1.bf16.msra.mxu0 0
  %242 = vmatprep.subr.bf16.mxu0 0
  %243 = vmatpush1.bf16.msra.mxu0 0
  %244 = vmatprep.subr.bf16.mxu0 0
  %245 = vmatpush1.bf16.msra.mxu0 0
  %246 = vmatprep.subr.bf16.mxu0 0
  %247 = vmatpush1.bf16.msra.mxu0 0
  %248 = vmatprep.subr.bf16.mxu0 0
  %249 = vmatpush1.bf16.msra.mxu0 0
  %250 = vmatprep.subr.bf16.mxu0 0
  %251 = vmatpush1.bf16.msra.mxu0 0
  %252 = vmatprep.mubr.bf16.mxu0 0
  %253 = vmatmul.mubr.bf16.gmra.mrb[0].mxu0 %v215
  %v254 = vpop.f32.mrb[0].mxu0
  %v255 = vadd.f32 %v186, %v254
  %v256 = vpop.f32.mrb[0].mxu0
  %v257 = vpop.f32.mrb[0].mxu0
  %v258 = vadd.f32 %v191, %v257
  %v259 = vpop.f32.mrb[0].mxu0
  %260 = vmatprep.mubr.bf16.mxu0 0
  %261 = vmatmul.mubr.bf16.gmra.mrb[0].mxu0 %v218
  %v262 = vpop.f32.mrb[0].mxu0
  %v263 = vadd.f32 %v196, %v262
  %v264 = vpop.f32.mrb[0].mxu0
  %v265 = vpop.f32.mrb[0].mxu0
  %v266 = vadd.f32 %v201, %v265
  %v267 = vpop.f32.mrb[0].mxu0
  %268 = vdwg.mxu0
  %v269 = vmax.f32 %v255, 0.0
  %v270 = vmax.f32 %v258, 0.0
  %v271 = vmax.f32 %v263, 0.0
  %v272 = vmax.f32 %v266, 0.0
  %v273 = vpack.c.bf16 %v270, %v269
  %v274 = vpack.c.bf16 %v272, %v271
  %v275 = vld [vmem:[%s6] sm:$0xf]
  %v276 = vld [vmem:[%s6 + $0x4] sm:$0xf]
  %v277 = vld [vmem:[%s6 + $0x8] sm:$0xf]
  %v278 = vld [vmem:[%s6 + $0xc] sm:$0xf]
  %v279 = vld [vmem:[%s7] sm:$0xff]
  %v280 = vld [vmem:[%s7 + $0x8] sm:$0xff]
  %v281 = vld [vmem:[%s7 + $0x10] sm:$0xff]
  %v282 = vld [vmem:[%s7 + $0x18] sm:$0xff]
  %284 = vset.pattern.permute.xlu0 0
  %285 = vperm.xlu0 %284, %v279
  %v286 = vpop.permute.xlu0 %285
  %289 = vset.pattern.permute.xlu0 0
  %290 = vperm.xlu0 %289, %v280
  %v291 = vpop.permute.xlu0 %290
  %294 = vset.pattern.permute.xlu0 0
  %295 = vperm.xlu0 %294, %v281
  %v296 = vpop.permute.xlu0 %295
  %299 = vset.pattern.permute.xlu0 0
  %300 = vperm.xlu0 %299, %v282
  %v301 = vpop.permute.xlu0 %300
  %v307 = vunpack.c.l.b16 %v275
  %v308 = vunpack.c.l.b16 %v276
  %v309 = vunpack.c.l.b16 %v277
  %v310 = vunpack.c.l.b16 %v278
  %v311 = vpack.c.b16 %v308, %v307
  %v312 = vpack.c.b16 %v310, %v309
  %v314 = vsel %vm213, %v311, 0
  %v317 = vsel %vm213, %v312, 0
  %319 = vmatprep.subr.bf16.mxu0 0
  %320 = vmatpush1.bf16.msra.mxu0 %v273
  %321 = vmatprep.subr.bf16.mxu0 0
  %322 = vmatpush1.bf16.msra.mxu0 %v274
  %323 = vmatprep.subr.bf16.mxu0 0
  %324 = vmatpush1.bf16.msra.mxu0 0
  %325 = vmatprep.subr.bf16.mxu0 0
  %326 = vmatpush1.bf16.msra.mxu0 0
  %327 = vmatprep.subr.bf16.mxu0 0
  %328 = vmatpush1.bf16.msra.mxu0 0
  %329 = vmatprep.subr.bf16.mxu0 0
  %330 = vmatpush1.bf16.msra.mxu0 0
  %331 = vmatprep.subr.bf16.mxu0 0
  %332 = vmatpush1.bf16.msra.mxu0 0
  %333 = vmatprep.subr.bf16.mxu0 0
  %334 = vmatpush1.bf16.msra.mxu0 0
  %335 = vmatprep.subr.bf16.mxu0 0
  %336 = vmatpush1.bf16.msra.mxu0 0
  %337 = vmatprep.subr.bf16.mxu0 0
  %338 = vmatpush1.bf16.msra.mxu0 0
  %339 = vmatprep.subr.bf16.mxu0 0
  %340 = vmatpush1.bf16.msra.mxu0 0
  %341 = vmatprep.subr.bf16.mxu0 0
  %342 = vmatpush1.bf16.msra.mxu0 0
  %343 = vmatprep.subr.bf16.mxu0 0
  %344 = vmatpush1.bf16.msra.mxu0 0
  %345 = vmatprep.subr.bf16.mxu0 0
  %346 = vmatpush1.bf16.msra.mxu0 0
  %347 = vmatprep.subr.bf16.mxu0 0
  %348 = vmatpush1.bf16.msra.mxu0 0
  %349 = vmatprep.subr.bf16.mxu0 0
  %350 = vmatpush1.bf16.msra.mxu0 0
  %351 = vmatprep.mubr.bf16.mxu0 0
  %352 = vmatmul.mubr.bf16.gmra.mrb[0].mxu0 %v314
  %v353 = vpop.f32.mrb[0].mxu0
  %v354 = vadd.f32 %v286, %v353
  %v355 = vpop.f32.mrb[0].mxu0
  %v356 = vpop.f32.mrb[0].mxu0
  %v357 = vadd.f32 %v291, %v356
  %v358 = vpop.f32.mrb[0].mxu0
  %359 = vmatprep.mubr.bf16.mxu0 0
  %360 = vmatmul.mubr.bf16.gmra.mrb[0].mxu0 %v317
  %v361 = vpop.f32.mrb[0].mxu0
  %v362 = vadd.f32 %v296, %v361
  %v363 = vpop.f32.mrb[0].mxu0
  %v364 = vpop.f32.mrb[0].mxu0
  %v365 = vadd.f32 %v301, %v364
  %v366 = vpop.f32.mrb[0].mxu0
  %367 = vdwg.mxu0
  %v368 = vmax.f32 %v354, 0.0
  %v369 = vmax.f32 %v357, 0.0
  %v370 = vmax.f32 %v362, 0.0
  %v371 = vmax.f32 %v365, 0.0
  %v372 = vpack.c.bf16 %v369, %v368
  %v373 = vpack.c.bf16 %v371, %v370
  %v374 = vld [vmem:[%s8] sm:$0xf]
  %v375 = vld [vmem:[%s8 + $0x4] sm:$0xf]
  %v376 = vld [vmem:[%s8 + $0x8] sm:$0xf]
  %v377 = vld [vmem:[%s8 + $0xc] sm:$0xf]
  %v378 = vld [vmem:[%s8 + $0x10] sm:$0xf]
  %v379 = vld [vmem:[%s8 + $0x14] sm:$0xf]
  %v380 = vld [vmem:[%s8 + $0x18] sm:$0xf]
  %v381 = vld [vmem:[%s8 + $0x1c] sm:$0xf]
  %v382 = vld [vmem:[%s9] sm:$0xff]
  %v383 = vld [vmem:[%s9 + $0x8] sm:$0xff]
  %v384 = vld [vmem:[%s9 + $0x10] sm:$0xff]
  %v385 = vld [vmem:[%s9 + $0x18] sm:$0xff]
  %v386 = vld [vmem:[%s9 + $0x20] sm:$0xff]
  %v387 = vld [vmem:[%s9 + $0x28] sm:$0xff]
  %v388 = vld [vmem:[%s9 + $0x30] sm:$0xff]
  %v389 = vld [vmem:[%s9 + $0x38] sm:$0xff]
  %391 = vset.pattern.permute.xlu0 0
  %392 = vperm.xlu0 %391, %v382
  %v393 = vpop.permute.xlu0 %392
  %396 = vset.pattern.permute.xlu0 0
  %397 = vperm.xlu0 %396, %v383
  %v398 = vpop.permute.xlu0 %397
  %401 = vset.pattern.permute.xlu0 0
  %402 = vperm.xlu0 %401, %v384
  %v403 = vpop.permute.xlu0 %402
  %406 = vset.pattern.permute.xlu0 0
  %407 = vperm.xlu0 %406, %v385
  %v408 = vpop.permute.xlu0 %407
  %411 = vset.pattern.permute.xlu0 0
  %412 = vperm.xlu0 %411, %v386
  %v413 = vpop.permute.xlu0 %412
  %416 = vset.pattern.permute.xlu0 0
  %417 = vperm.xlu0 %416, %v387
  %v418 = vpop.permute.xlu0 %417
  %421 = vset.pattern.permute.xlu0 0
  %422 = vperm.xlu0 %421, %v388
  %v423 = vpop.permute.xlu0 %422
  %426 = vset.pattern.permute.xlu0 0
  %427 = vperm.xlu0 %426, %v389
  %v428 = vpop.permute.xlu0 %427
  %v438 = vunpack.c.l.b16 %v374
  %v439 = vunpack.c.l.b16 %v375
  %v440 = vunpack.c.l.b16 %v376
  %v441 = vunpack.c.l.b16 %v377
  %v442 = vunpack.c.l.b16 %v378
  %v443 = vunpack.c.l.b16 %v379
  %v444 = vunpack.c.l.b16 %v380
  %v445 = vunpack.c.l.b16 %v381
  %v446 = vpack.c.b16 %v439, %v438
  %v447 = vpack.c.b16 %v441, %v440
  %v448 = vpack.c.b16 %v443, %v442
  %v449 = vpack.c.b16 %v445, %v444
  %v451 = vsel %vm213, %v446, 0
  %v454 = vsel %vm213, %v447, 0
  %v457 = vsel %vm213, %v448, 0
  %v460 = vsel %vm213, %v449, 0
  %462 = vmatprep.subr.bf16.mxu0 0
  %463 = vmatpush1.bf16.msra.mxu0 %v372
  %464 = vmatprep.subr.bf16.mxu0 0
  %465 = vmatpush1.bf16.msra.mxu0 %v373
  %466 = vmatprep.subr.bf16.mxu0 0
  %467 = vmatpush1.bf16.msra.mxu0 0
  %468 = vmatprep.subr.bf16.mxu0 0
  %469 = vmatpush1.bf16.msra.mxu0 0
  %470 = vmatprep.subr.bf16.mxu0 0
  %471 = vmatpush1.bf16.msra.mxu0 0
  %472 = vmatprep.subr.bf16.mxu0 0
  %473 = vmatpush1.bf16.msra.mxu0 0
  %474 = vmatprep.subr.bf16.mxu0 0
  %475 = vmatpush1.bf16.msra.mxu0 0
  %476 = vmatprep.subr.bf16.mxu0 0
  %477 = vmatpush1.bf16.msra.mxu0 0
  %478 = vmatprep.subr.bf16.mxu0 0
  %479 = vmatpush1.bf16.msra.mxu0 0
  %480 = vmatprep.subr.bf16.mxu0 0
  %481 = vmatpush1.bf16.msra.mxu0 0
  %482 = vmatprep.subr.bf16.mxu0 0
  %483 = vmatpush1.bf16.msra.mxu0 0
  %484 = vmatprep.subr.bf16.mxu0 0
  %485 = vmatpush1.bf16.msra.mxu0 0
  %486 = vmatprep.subr.bf16.mxu0 0
  %487 = vmatpush1.bf16.msra.mxu0 0
  %488 = vmatprep.subr.bf16.mxu0 0
  %489 = vmatpush1.bf16.msra.mxu0 0
  %490 = vmatprep.subr.bf16.mxu0 0
  %491 = vmatpush1.bf16.msra.mxu0 0
  %492 = vmatprep.subr.bf16.mxu0 0
  %493 = vmatpush1.bf16.msra.mxu0 0
  %494 = vmatprep.mubr.bf16.mxu0 0
  %495 = vmatmul.mubr.bf16.gmra.mrb[0].mxu0 %v451
  %v496 = vpop.f32.mrb[0].mxu0
  %v497 = vadd.f32 %v393, %v496
  %v498 = vpop.f32.mrb[0].mxu0
  %v499 = vpop.f32.mrb[0].mxu0
  %v500 = vadd.f32 %v398, %v499
  %v501 = vpop.f32.mrb[0].mxu0
  %502 = vmatprep.mubr.bf16.mxu0 0
  %503 = vmatmul.mubr.bf16.gmra.mrb[0].mxu0 %v454
  %v504 = vpop.f32.mrb[0].mxu0
  %v505 = vadd.f32 %v403, %v504
  %v506 = vpop.f32.mrb[0].mxu0
  %v507 = vpop.f32.mrb[0].mxu0
  %v508 = vadd.f32 %v408, %v507
  %v509 = vpop.f32.mrb[0].mxu0
  %510 = vmatprep.mubr.bf16.mxu0 0
  %511 = vmatmul.mubr.bf16.gmra.mrb[0].mxu0 %v457
  %v512 = vpop.f32.mrb[0].mxu0
  %v513 = vadd.f32 %v413, %v512
  %v514 = vpop.f32.mrb[0].mxu0
  %v515 = vpop.f32.mrb[0].mxu0
  %v516 = vadd.f32 %v418, %v515
  %v517 = vpop.f32.mrb[0].mxu0
  %518 = vmatprep.mubr.bf16.mxu0 0
  %519 = vmatmul.mubr.bf16.gmra.mrb[0].mxu0 %v460
  %v520 = vpop.f32.mrb[0].mxu0
  %v521 = vadd.f32 %v423, %v520
  %v522 = vpop.f32.mrb[0].mxu0
  %v523 = vpop.f32.mrb[0].mxu0
  %v524 = vadd.f32 %v428, %v523
  %v525 = vpop.f32.mrb[0].mxu0
  %526 = vdwg.mxu0
  %vm527 = vcmp.eq.s32.totalorder %v66, 1
  %v528 = vsel %vm527, 1, 0
  %v529 = vlaneseq
  %v530 = vshrl.u32 %v529, 7
  %v531 = vsub.s32 0, %v530
  %v532 = vrot.slane %v528, %v531
  %vm533 = vcmp.eq.s32.totalorder %v532, 1
  %v534 = vsel %vm533, %v513, %v497
  %v535 = vsel %vm533, %v516, %v500
  %v536 = vsel %vm533, %v521, %v505
  %v537 = vsel %vm533, %v524, %v508
  %v538 = vpack.c.bf16 %v535, %v534
  %v539 = vpack.c.bf16 %v537, %v536
  %v540 = vld [vmem:[%s10] sm:$0xf]
  %v541 = vld [vmem:[%s10 + $0x4] sm:$0xf]
  %v542 = vld [vmem:[%s10 + $0x8] sm:$0xf]
  %v543 = vld [vmem:[%s10 + $0xc] sm:$0xf]
  %v544 = vld [vmem:[%s11] sm:$0xff]
  %v545 = vld [vmem:[%s11 + $0x8] sm:$0xff]
  %v546 = vld [vmem:[%s11 + $0x10] sm:$0xff]
  %v547 = vld [vmem:[%s11 + $0x18] sm:$0xff]
  %549 = vset.pattern.permute.xlu0 0
  %550 = vperm.xlu0 %549, %v544
  %v551 = vpop.permute.xlu0 %550
  %554 = vset.pattern.permute.xlu0 0
  %555 = vperm.xlu0 %554, %v545
  %v556 = vpop.permute.xlu0 %555
  %559 = vset.pattern.permute.xlu0 0
  %560 = vperm.xlu0 %559, %v546
  %v561 = vpop.permute.xlu0 %560
  %564 = vset.pattern.permute.xlu0 0
  %565 = vperm.xlu0 %564, %v547
  %v566 = vpop.permute.xlu0 %565
  %v572 = vunpack.c.l.b16 %v540
  %v573 = vunpack.c.l.b16 %v541
  %v574 = vunpack.c.l.b16 %v542
  %v575 = vunpack.c.l.b16 %v543
  %v576 = vpack.c.b16 %v573, %v572
  %v577 = vpack.c.b16 %v575, %v574
  %v579 = vsel %vm213, %v576, 0
  %v582 = vsel %vm213, %v577, 0
  %584 = vmatprep.subr.bf16.mxu0 0
  %585 = vmatpush1.bf16.msra.mxu0 %v538
  %586 = vmatprep.subr.bf16.mxu0 0
  %587 = vmatpush1.bf16.msra.mxu0 %v539
  %588 = vmatprep.subr.bf16.mxu0 0
  %589 = vmatpush1.bf16.msra.mxu0 0
  %590 = vmatprep.subr.bf16.mxu0 0
  %591 = vmatpush1.bf16.msra.mxu0 0
  %592 = vmatprep.subr.bf16.mxu0 0
  %593 = vmatpush1.bf16.msra.mxu0 0
  %594 = vmatprep.subr.bf16.mxu0 0
  %595 = vmatpush1.bf16.msra.mxu0 0
  %596 = vmatprep.subr.bf16.mxu0 0
  %597 = vmatpush1.bf16.msra.mxu0 0
  %598 = vmatprep.subr.bf16.mxu0 0
  %599 = vmatpush1.bf16.msra.mxu0 0
  %600 = vmatprep.subr.bf16.mxu0 0
  %601 = vmatpush1.bf16.msra.mxu0 0
  %602 = vmatprep.subr.bf16.mxu0 0
  %603 = vmatpush1.bf16.msra.mxu0 0
  %604 = vmatprep.subr.bf16.mxu0 0
  %605 = vmatpush1.bf16.msra.mxu0 0
  %606 = vmatprep.subr.bf16.mxu0 0
  %607 = vmatpush1.bf16.msra.mxu0 0
  %608 = vmatprep.subr.bf16.mxu0 0
  %609 = vmatpush1.bf16.msra.mxu0 0
  %610 = vmatprep.subr.bf16.mxu0 0
  %611 = vmatpush1.bf16.msra.mxu0 0
  %612 = vmatprep.subr.bf16.mxu0 0
  %613 = vmatpush1.bf16.msra.mxu0 0
  %614 = vmatprep.subr.bf16.mxu0 0
  %615 = vmatpush1.bf16.msra.mxu0 0
  %616 = vmatprep.mubr.bf16.mxu0 0
  %617 = vmatmul.mubr.bf16.gmra.mrb[0].mxu0 %v579
  %v618 = vpop.f32.mrb[0].mxu0
  %v619 = vadd.f32 %v551, %v618
  %v620 = vpop.f32.mrb[0].mxu0
  %v621 = vpop.f32.mrb[0].mxu0
  %v622 = vadd.f32 %v556, %v621
  %v623 = vpop.f32.mrb[0].mxu0
  %624 = vmatprep.mubr.bf16.mxu0 0
  %625 = vmatmul.mubr.bf16.gmra.mrb[0].mxu0 %v582
  %v626 = vpop.f32.mrb[0].mxu0
  %v627 = vadd.f32 %v561, %v626
  %v628 = vpop.f32.mrb[0].mxu0
  %v629 = vpop.f32.mrb[0].mxu0
  %v630 = vadd.f32 %v566, %v629
  %v631 = vpop.f32.mrb[0].mxu0
  %632 = vdwg.mxu0
  %v633 = vmax.f32 %v619, 0.0
  %v634 = vmax.f32 %v622, 0.0
  %v635 = vmax.f32 %v627, 0.0
  %v636 = vmax.f32 %v630, 0.0
  %v637 = vpack.c.bf16 %v634, %v633
  %v638 = vpack.c.bf16 %v636, %v635
  %v639 = vld [vmem:[%s12] sm:$0xf]
  %v640 = vld [vmem:[%s12 + $0x4] sm:$0xf]
  %v641 = vld [vmem:[%s12 + $0x8] sm:$0xf]
  %v642 = vld [vmem:[%s12 + $0xc] sm:$0xf]
  %v643 = vld [vmem:[%s13] sm:$0xff]
  %v644 = vld [vmem:[%s13 + $0x8] sm:$0xff]
  %v645 = vld [vmem:[%s13 + $0x10] sm:$0xff]
  %v646 = vld [vmem:[%s13 + $0x18] sm:$0xff]
  %648 = vset.pattern.permute.xlu0 0
  %649 = vperm.xlu0 %648, %v643
  %v650 = vpop.permute.xlu0 %649
  %653 = vset.pattern.permute.xlu0 0
  %654 = vperm.xlu0 %653, %v644
  %v655 = vpop.permute.xlu0 %654
  %658 = vset.pattern.permute.xlu0 0
  %659 = vperm.xlu0 %658, %v645
  %v660 = vpop.permute.xlu0 %659
  %663 = vset.pattern.permute.xlu0 0
  %664 = vperm.xlu0 %663, %v646
  %v665 = vpop.permute.xlu0 %664
  %v671 = vunpack.c.l.b16 %v639
  %v672 = vunpack.c.l.b16 %v640
  %v673 = vunpack.c.l.b16 %v641
  %v674 = vunpack.c.l.b16 %v642
  %v675 = vpack.c.b16 %v672, %v671
  %v676 = vpack.c.b16 %v674, %v673
  %v678 = vsel %vm213, %v675, 0
  %v681 = vsel %vm213, %v676, 0
  %683 = vmatprep.subr.bf16.mxu0 0
  %684 = vmatpush1.bf16.msra.mxu0 %v637
  %685 = vmatprep.subr.bf16.mxu0 0
  %686 = vmatpush1.bf16.msra.mxu0 %v638
  %687 = vmatprep.subr.bf16.mxu0 0
  %688 = vmatpush1.bf16.msra.mxu0 0
  %689 = vmatprep.subr.bf16.mxu0 0
  %690 = vmatpush1.bf16.msra.mxu0 0
  %691 = vmatprep.subr.bf16.mxu0 0
  %692 = vmatpush1.bf16.msra.mxu0 0
  %693 = vmatprep.subr.bf16.mxu0 0
  %694 = vmatpush1.bf16.msra.mxu0 0
  %695 = vmatprep.subr.bf16.mxu0 0
  %696 = vmatpush1.bf16.msra.mxu0 0
  %697 = vmatprep.subr.bf16.mxu0 0
  %698 = vmatpush1.bf16.msra.mxu0 0
  %699 = vmatprep.subr.bf16.mxu0 0
  %700 = vmatpush1.bf16.msra.mxu0 0
  %701 = vmatprep.subr.bf16.mxu0 0
  %702 = vmatpush1.bf16.msra.mxu0 0
  %703 = vmatprep.subr.bf16.mxu0 0
  %704 = vmatpush1.bf16.msra.mxu0 0
  %705 = vmatprep.subr.bf16.mxu0 0
  %706 = vmatpush1.bf16.msra.mxu0 0
  %707 = vmatprep.subr.bf16.mxu0 0
  %708 = vmatpush1.bf16.msra.mxu0 0
  %709 = vmatprep.subr.bf16.mxu0 0
  %710 = vmatpush1.bf16.msra.mxu0 0
  %711 = vmatprep.subr.bf16.mxu0 0
  %712 = vmatpush1.bf16.msra.mxu0 0
  %713 = vmatprep.subr.bf16.mxu0 0
  %714 = vmatpush1.bf16.msra.mxu0 0
  %715 = vmatprep.mubr.bf16.mxu0 0
  %716 = vmatmul.mubr.bf16.gmra.mrb[0].mxu0 %v678
  %v717 = vpop.f32.mrb[0].mxu0
  %v718 = vadd.f32 %v650, %v717
  %v719 = vpop.f32.mrb[0].mxu0
  %v720 = vpop.f32.mrb[0].mxu0
  %v721 = vadd.f32 %v655, %v720
  %v722 = vpop.f32.mrb[0].mxu0
  %723 = vmatprep.mubr.bf16.mxu0 0
  %724 = vmatmul.mubr.bf16.gmra.mrb[0].mxu0 %v681
  %v725 = vpop.f32.mrb[0].mxu0
  %v726 = vadd.f32 %v660, %v725
  %v727 = vpop.f32.mrb[0].mxu0
  %v728 = vpop.f32.mrb[0].mxu0
  %v729 = vadd.f32 %v665, %v728
  %v730 = vpop.f32.mrb[0].mxu0
  %731 = vdwg.mxu0
  %v732 = vmax.f32 %v718, 0.0
  %v733 = vmax.f32 %v721, 0.0
  %v734 = vmax.f32 %v726, 0.0
  %v735 = vmax.f32 %v729, 0.0
  %v736 = vpack.c.bf16 %v733, %v732
  %v737 = vpack.c.bf16 %v735, %v734
  %v738 = vld [vmem:[%s14] sm:$0xf]
  %v739 = vld [vmem:[%s14 + $0x4] sm:$0xf]
  %v740 = vld [vmem:[%s14 + $0x8] sm:$0xf]
  %v741 = vld [vmem:[%s14 + $0xc] sm:$0xf]
  %v742 = vld [vmem:[%s14 + $0x10] sm:$0xf]
  %v743 = vld [vmem:[%s14 + $0x14] sm:$0xf]
  %v744 = vld [vmem:[%s14 + $0x18] sm:$0xf]
  %v745 = vld [vmem:[%s14 + $0x1c] sm:$0xf]
  %v746 = vld [vmem:[%s15] sm:$0xff]
  %v747 = vld [vmem:[%s15 + $0x8] sm:$0xff]
  %v748 = vld [vmem:[%s15 + $0x10] sm:$0xff]
  %v749 = vld [vmem:[%s15 + $0x18] sm:$0xff]
  %v750 = vld [vmem:[%s15 + $0x20] sm:$0xff]
  %v751 = vld [vmem:[%s15 + $0x28] sm:$0xff]
  %v752 = vld [vmem:[%s15 + $0x30] sm:$0xff]
  %v753 = vld [vmem:[%s15 + $0x38] sm:$0xff]
  %755 = vset.pattern.permute.xlu0 0
  %756 = vperm.xlu0 %755, %v746
  %v757 = vpop.permute.xlu0 %756
  %760 = vset.pattern.permute.xlu0 0
  %761 = vperm.xlu0 %760, %v747
  %v762 = vpop.permute.xlu0 %761
  %765 = vset.pattern.permute.xlu0 0
  %766 = vperm.xlu0 %765, %v748
  %v767 = vpop.permute.xlu0 %766
  %770 = vset.pattern.permute.xlu0 0
  %771 = vperm.xlu0 %770, %v749
  %v772 = vpop.permute.xlu0 %771
  %775 = vset.pattern.permute.xlu0 0
  %776 = vperm.xlu0 %775, %v750
  %v777 = vpop.permute.xlu0 %776
  %780 = vset.pattern.permute.xlu0 0
  %781 = vperm.xlu0 %780, %v751
  %v782 = vpop.permute.xlu0 %781
  %785 = vset.pattern.permute.xlu0 0
  %786 = vperm.xlu0 %785, %v752
  %v787 = vpop.permute.xlu0 %786
  %790 = vset.pattern.permute.xlu0 0
  %791 = vperm.xlu0 %790, %v753
  %v792 = vpop.permute.xlu0 %791
  %v802 = vunpack.c.l.b16 %v738
  %v803 = vunpack.c.l.b16 %v739
  %v804 = vunpack.c.l.b16 %v740
  %v805 = vunpack.c.l.b16 %v741
  %v806 = vunpack.c.l.b16 %v742
  %v807 = vunpack.c.l.b16 %v743
  %v808 = vunpack.c.l.b16 %v744
  %v809 = vunpack.c.l.b16 %v745
  %v810 = vpack.c.b16 %v803, %v802
  %v811 = vpack.c.b16 %v805, %v804
  %v812 = vpack.c.b16 %v807, %v806
  %v813 = vpack.c.b16 %v809, %v808
  %v815 = vsel %vm213, %v810, 0
  %v818 = vsel %vm213, %v811, 0
  %v821 = vsel %vm213, %v812, 0
  %v824 = vsel %vm213, %v813, 0
  %826 = vmatprep.subr.bf16.mxu0 0
  %827 = vmatpush1.bf16.msra.mxu0 %v736
  %828 = vmatprep.subr.bf16.mxu0 0
  %829 = vmatpush1.bf16.msra.mxu0 %v737
  %830 = vmatprep.subr.bf16.mxu0 0
  %831 = vmatpush1.bf16.msra.mxu0 0
  %832 = vmatprep.subr.bf16.mxu0 0
  %833 = vmatpush1.bf16.msra.mxu0 0
  %834 = vmatprep.subr.bf16.mxu0 0
  %835 = vmatpush1.bf16.msra.mxu0 0
  %836 = vmatprep.subr.bf16.mxu0 0
  %837 = vmatpush1.bf16.msra.mxu0 0
  %838 = vmatprep.subr.bf16.mxu0 0
  %839 = vmatpush1.bf16.msra.mxu0 0
  %840 = vmatprep.subr.bf16.mxu0 0
  %841 = vmatpush1.bf16.msra.mxu0 0
  %842 = vmatprep.subr.bf16.mxu0 0
  %843 = vmatpush1.bf16.msra.mxu0 0
  %844 = vmatprep.subr.bf16.mxu0 0
  %845 = vmatpush1.bf16.msra.mxu0 0
  %846 = vmatprep.subr.bf16.mxu0 0
  %847 = vmatpush1.bf16.msra.mxu0 0
  %848 = vmatprep.subr.bf16.mxu0 0
  %849 = vmatpush1.bf16.msra.mxu0 0
  %850 = vmatprep.subr.bf16.mxu0 0
  %851 = vmatpush1.bf16.msra.mxu0 0
  %852 = vmatprep.subr.bf16.mxu0 0
  %853 = vmatpush1.bf16.msra.mxu0 0
  %854 = vmatprep.subr.bf16.mxu0 0
  %855 = vmatpush1.bf16.msra.mxu0 0
  %856 = vmatprep.subr.bf16.mxu0 0
  %857 = vmatpush1.bf16.msra.mxu0 0
  %858 = vmatprep.mubr.bf16.mxu0 0
  %859 = vmatmul.mubr.bf16.gmra.mrb[0].mxu0 %v815
  %v860 = vpop.f32.mrb[0].mxu0
  %v861 = vadd.f32 %v757, %v860
  %v862 = vpop.f32.mrb[0].mxu0
  %v863 = vpop.f32.mrb[0].mxu0
  %v864 = vadd.f32 %v762, %v863
  %v865 = vpop.f32.mrb[0].mxu0
  %866 = vmatprep.mubr.bf16.mxu0 0
  %867 = vmatmul.mubr.bf16.gmra.mrb[0].mxu0 %v818
  %v868 = vpop.f32.mrb[0].mxu0
  %v869 = vadd.f32 %v767, %v868
  %v870 = vpop.f32.mrb[0].mxu0
  %v871 = vpop.f32.mrb[0].mxu0
  %v872 = vadd.f32 %v772, %v871
  %v873 = vpop.f32.mrb[0].mxu0
  %874 = vmatprep.mubr.bf16.mxu0 0
  %875 = vmatmul.mubr.bf16.gmra.mrb[0].mxu0 %v821
  %v876 = vpop.f32.mrb[0].mxu0
  %v877 = vadd.f32 %v777, %v876
  %v878 = vpop.f32.mrb[0].mxu0
  %v879 = vpop.f32.mrb[0].mxu0
  %v880 = vadd.f32 %v782, %v879
  %v881 = vpop.f32.mrb[0].mxu0
  %882 = vmatprep.mubr.bf16.mxu0 0
  %883 = vmatmul.mubr.bf16.gmra.mrb[0].mxu0 %v824
  %v884 = vpop.f32.mrb[0].mxu0
  %v885 = vadd.f32 %v787, %v884
  %v886 = vpop.f32.mrb[0].mxu0
  %v887 = vpop.f32.mrb[0].mxu0
  %v888 = vadd.f32 %v792, %v887
  %v889 = vpop.f32.mrb[0].mxu0
  %890 = vdwg.mxu0
  %v891 = vsel %vm533, %v877, %v861
  %v892 = vsel %vm533, %v880, %v864
  %v893 = vsel %vm533, %v885, %v869
  %v894 = vsel %vm533, %v888, %v872
  %v895 = vmax.f32 %v891, 0.0
  %v896 = vmax.f32 %v892, 0.0
  %v897 = vmax.f32 %v893, 0.0
  %v898 = vmax.f32 %v894, 0.0
  %v899 = vpack.c.bf16 %v896, %v895
  %v900 = vpack.c.bf16 %v898, %v897
  %v901 = vld [vmem:[%s16] sm:$0xf]
  %v902 = vld [vmem:[%s16 + $0x4] sm:$0xf]
  %v903 = vld [vmem:[%s16 + $0x8] sm:$0xf]
  %v904 = vld [vmem:[%s16 + $0xc] sm:$0xf]
  %v905 = vld [vmem:[%s16 + $0x10] sm:$0xf]
  %v906 = vld [vmem:[%s16 + $0x14] sm:$0xf]
  %v907 = vld [vmem:[%s16 + $0x18] sm:$0xf]
  %v908 = vld [vmem:[%s16 + $0x1c] sm:$0xf]
  %v909 = vld [vmem:[%s16 + $0x20] sm:$0xf]
  %v910 = vld [vmem:[%s16 + $0x24] sm:$0xf]
  %v911 = vld [vmem:[%s16 + $0x28] sm:$0xf]
  %v912 = vld [vmem:[%s16 + $0x2c] sm:$0xf]
  %v913 = vld [vmem:[%s16 + $0x30] sm:$0xf]
  %v914 = vld [vmem:[%s16 + $0x34] sm:$0xf]
  %v915 = vld [vmem:[%s16 + $0x38] sm:$0xf]
  %v916 = vld [vmem:[%s16 + $0x3c] sm:$0xf]
  %v917 = vld [vmem:[%s17] sm:$0xff]
  %v918 = vld [vmem:[%s17 + $0x8] sm:$0xff]
  %v919 = vld [vmem:[%s17 + $0x10] sm:$0xff]
  %v920 = vld [vmem:[%s17 + $0x18] sm:$0xff]
  %v921 = vld [vmem:[%s17 + $0x20] sm:$0xff]
  %v922 = vld [vmem:[%s17 + $0x28] sm:$0xff]
  %v923 = vld [vmem:[%s17 + $0x30] sm:$0xff]
  %v924 = vld [vmem:[%s17 + $0x38] sm:$0xff]
  %v925 = vld [vmem:[%s17 + $0x40] sm:$0xff]
  %v926 = vld [vmem:[%s17 + $0x48] sm:$0xff]
  %v927 = vld [vmem:[%s17 + $0x50] sm:$0xff]
  %v928 = vld [vmem:[%s17 + $0x58] sm:$0xff]
  %v929 = vld [vmem:[%s17 + $0x60] sm:$0xff]
  %v930 = vld [vmem:[%s17 + $0x68] sm:$0xff]
  %v931 = vld [vmem:[%s17 + $0x70] sm:$0xff]
  %v932 = vld [vmem:[%s17 + $0x78] sm:$0xff]
  %934 = vset.pattern.permute.xlu0 0
  %935 = vperm.xlu0 %934, %v917
  %v936 = vpop.permute.xlu0 %935
  %939 = vset.pattern.permute.xlu0 0
  %940 = vperm.xlu0 %939, %v918
  %v941 = vpop.permute.xlu0 %940
  %944 = vset.pattern.permute.xlu0 0
  %945 = vperm.xlu0 %944, %v919
  %v946 = vpop.permute.xlu0 %945
  %949 = vset.pattern.permute.xlu0 0
  %950 = vperm.xlu0 %949, %v920
  %v951 = vpop.permute.xlu0 %950
  %954 = vset.pattern.permute.xlu0 0
  %955 = vperm.xlu0 %954, %v921
  %v956 = vpop.permute.xlu0 %955
  %959 = vset.pattern.permute.xlu0 0
  %960 = vperm.xlu0 %959, %v922
  %v961 = vpop.permute.xlu0 %960
  %964 = vset.pattern.permute.xlu0 0
  %965 = vperm.xlu0 %964, %v923
  %v966 = vpop.permute.xlu0 %965
  %969 = vset.pattern.permute.xlu0 0
  %970 = vperm.xlu0 %969, %v924
  %v971 = vpop.permute.xlu0 %970
  %974 = vset.pattern.permute.xlu0 0
  %975 = vperm.xlu0 %974, %v925
  %v976 = vpop.permute.xlu0 %975
  %979 = vset.pattern.permute.xlu0 0
  %980 = vperm.xlu0 %979, %v926
  %v981 = vpop.permute.xlu0 %980
  %984 = vset.pattern.permute.xlu0 0
  %985 = vperm.xlu0 %984, %v927
  %v986 = vpop.permute.xlu0 %985
  %989 = vset.pattern.permute.xlu0 0
  %990 = vperm.xlu0 %989, %v928
  %v991 = vpop.permute.xlu0 %990
  %994 = vset.pattern.permute.xlu0 0
  %995 = vperm.xlu0 %994, %v929
  %v996 = vpop.permute.xlu0 %995
  %999 = vset.pattern.permute.xlu0 0
  %1000 = vperm.xlu0 %999, %v930
  %v1001 = vpop.permute.xlu0 %1000
  %1004 = vset.pattern.permute.xlu0 0
  %1005 = vperm.xlu0 %1004, %v931
  %v1006 = vpop.permute.xlu0 %1005
  %1009 = vset.pattern.permute.xlu0 0
  %1010 = vperm.xlu0 %1009, %v932
  %v1011 = vpop.permute.xlu0 %1010
  %v1029 = vunpack.c.l.b16 %v901
  %v1030 = vunpack.c.l.b16 %v902
  %v1031 = vunpack.c.l.b16 %v903
  %v1032 = vunpack.c.l.b16 %v904
  %v1033 = vunpack.c.l.b16 %v905
  %v1034 = vunpack.c.l.b16 %v906
  %v1035 = vunpack.c.l.b16 %v907
  %v1036 = vunpack.c.l.b16 %v908
  %v1037 = vunpack.c.l.b16 %v909
  %v1038 = vunpack.c.l.b16 %v910
  %v1039 = vunpack.c.l.b16 %v911
  %v1040 = vunpack.c.l.b16 %v912
  %v1041 = vunpack.c.l.b16 %v913
  %v1042 = vunpack.c.l.b16 %v914
  %v1043 = vunpack.c.l.b16 %v915
  %v1044 = vunpack.c.l.b16 %v916
  %v1045 = vpack.c.b16 %v1030, %v1029
  %v1046 = vpack.c.b16 %v1032, %v1031
  %v1047 = vpack.c.b16 %v1034, %v1033
  %v1048 = vpack.c.b16 %v1036, %v1035
  %v1049 = vpack.c.b16 %v1038, %v1037
  %v1050 = vpack.c.b16 %v1040, %v1039
  %v1051 = vpack.c.b16 %v1042, %v1041
  %v1052 = vpack.c.b16 %v1044, %v1043
  %v1054 = vsel %vm213, %v1045, 0
  %v1057 = vsel %vm213, %v1046, 0
  %v1060 = vsel %vm213, %v1047, 0
  %v1063 = vsel %vm213, %v1048, 0
  %v1066 = vsel %vm213, %v1049, 0
  %v1069 = vsel %vm213, %v1050, 0
  %v1072 = vsel %vm213, %v1051, 0
  %v1075 = vsel %vm213, %v1052, 0
  %1077 = vmatprep.subr.bf16.mxu0 0
  %1078 = vmatpush1.bf16.msra.mxu0 %v899
  %1079 = vmatprep.subr.bf16.mxu0 0
  %1080 = vmatpush1.bf16.msra.mxu0 %v900
  %1081 = vmatprep.subr.bf16.mxu0 0
  %1082 = vmatpush1.bf16.msra.mxu0 0
  %1083 = vmatprep.subr.bf16.mxu0 0
  %1084 = vmatpush1.bf16.msra.mxu0 0
  %1085 = vmatprep.subr.bf16.mxu0 0
  %1086 = vmatpush1.bf16.msra.mxu0 0
  %1087 = vmatprep.subr.bf16.mxu0 0
  %1088 = vmatpush1.bf16.msra.mxu0 0
  %1089 = vmatprep.subr.bf16.mxu0 0
  %1090 = vmatpush1.bf16.msra.mxu0 0
  %1091 = vmatprep.subr.bf16.mxu0 0
  %1092 = vmatpush1.bf16.msra.mxu0 0
  %1093 = vmatprep.subr.bf16.mxu0 0
  %1094 = vmatpush1.bf16.msra.mxu0 0
  %1095 = vmatprep.subr.bf16.mxu0 0
  %1096 = vmatpush1.bf16.msra.mxu0 0
  %1097 = vmatprep.subr.bf16.mxu0 0
  %1098 = vmatpush1.bf16.msra.mxu0 0
  %1099 = vmatprep.subr.bf16.mxu0 0
  %1100 = vmatpush1.bf16.msra.mxu0 0
  %1101 = vmatprep.subr.bf16.mxu0 0
  %1102 = vmatpush1.bf16.msra.mxu0 0
  %1103 = vmatprep.subr.bf16.mxu0 0
  %1104 = vmatpush1.bf16.msra.mxu0 0
  %1105 = vmatprep.subr.bf16.mxu0 0
  %1106 = vmatpush1.bf16.msra.mxu0 0
  %1107 = vmatprep.subr.bf16.mxu0 0
  %1108 = vmatpush1.bf16.msra.mxu0 0
  %1109 = vmatprep.mubr.bf16.mxu0 0
  %1110 = vmatmul.mubr.bf16.gmra.mrb[0].mxu0 %v1054
  %v1111 = vpop.f32.mrb[0].mxu0
  %v1112 = vadd.f32 %v936, %v1111
  %v1113 = vpop.f32.mrb[0].mxu0
  %v1114 = vpop.f32.mrb[0].mxu0
  %v1115 = vadd.f32 %v941, %v1114
  %v1116 = vpop.f32.mrb[0].mxu0
  %1117 = vmatprep.mubr.bf16.mxu0 0
  %1118 = vmatmul.mubr.bf16.gmra.mrb[0].mxu0 %v1057
  %v1119 = vpop.f32.mrb[0].mxu0
  %v1120 = vadd.f32 %v946, %v1119
  %v1121 = vpop.f32.mrb[0].mxu0
  %v1122 = vpop.f32.mrb[0].mxu0
  %v1123 = vadd.f32 %v951, %v1122
  %v1124 = vpop.f32.mrb[0].mxu0
  %1125 = vmatprep.mubr.bf16.mxu0 0
  %1126 = vmatmul.mubr.bf16.gmra.mrb[0].mxu0 %v1060
  %v1127 = vpop.f32.mrb[0].mxu0
  %v1128 = vadd.f32 %v956, %v1127
  %v1129 = vpop.f32.mrb[0].mxu0
  %v1130 = vpop.f32.mrb[0].mxu0
  %v1131 = vadd.f32 %v961, %v1130
  %v1132 = vpop.f32.mrb[0].mxu0
  %1133 = vmatprep.mubr.bf16.mxu0 0
  %1134 = vmatmul.mubr.bf16.gmra.mrb[0].mxu0 %v1063
  %v1135 = vpop.f32.mrb[0].mxu0
  %v1136 = vadd.f32 %v966, %v1135
  %v1137 = vpop.f32.mrb[0].mxu0
  %v1138 = vpop.f32.mrb[0].mxu0
  %v1139 = vadd.f32 %v971, %v1138
  %v1140 = vpop.f32.mrb[0].mxu0
  %1141 = vmatprep.mubr.bf16.mxu0 0
  %1142 = vmatmul.mubr.bf16.gmra.mrb[0].mxu0 %v1066
  %v1143 = vpop.f32.mrb[0].mxu0
  %v1144 = vadd.f32 %v976, %v1143
  %v1145 = vpop.f32.mrb[0].mxu0
  %v1146 = vpop.f32.mrb[0].mxu0
  %v1147 = vadd.f32 %v981, %v1146
  %v1148 = vpop.f32.mrb[0].mxu0
  %1149 = vmatprep.mubr.bf16.mxu0 0
  %1150 = vmatmul.mubr.bf16.gmra.mrb[0].mxu0 %v1069
  %v1151 = vpop.f32.mrb[0].mxu0
  %v1152 = vadd.f32 %v986, %v1151
  %v1153 = vpop.f32.mrb[0].mxu0
  %v1154 = vpop.f32.mrb[0].mxu0
  %v1155 = vadd.f32 %v991, %v1154
  %v1156 = vpop.f32.mrb[0].mxu0
  %1157 = vmatprep.mubr.bf16.mxu0 0
  %1158 = vmatmul.mubr.bf16.gmra.mrb[0].mxu0 %v1072
  %v1159 = vpop.f32.mrb[0].mxu0
  %v1160 = vadd.f32 %v996, %v1159
  %v1161 = vpop.f32.mrb[0].mxu0
  %v1162 = vpop.f32.mrb[0].mxu0
  %v1163 = vadd.f32 %v1001, %v1162
  %v1164 = vpop.f32.mrb[0].mxu0
  %1165 = vmatprep.mubr.bf16.mxu0 0
  %1166 = vmatmul.mubr.bf16.gmra.mrb[0].mxu0 %v1075
  %v1167 = vpop.f32.mrb[0].mxu0
  %v1168 = vadd.f32 %v1006, %v1167
  %v1169 = vpop.f32.mrb[0].mxu0
  %v1170 = vpop.f32.mrb[0].mxu0
  %v1171 = vadd.f32 %v1011, %v1170
  %v1172 = vpop.f32.mrb[0].mxu0
  %1173 = vdwg.mxu0
  %v1174 = vsel %vm533, %v1144, %v1112
  %v1175 = vsel %vm533, %v1147, %v1115
  %v1176 = vsel %vm533, %v1152, %v1120
  %v1177 = vsel %vm533, %v1155, %v1123
  %v1178 = vsel %vm533, %v1160, %v1128
  %v1179 = vsel %vm533, %v1163, %v1131
  %v1180 = vsel %vm533, %v1168, %v1136
  %v1181 = vsel %vm533, %v1171, %v1139
  %v1182 = vpack.c.bf16 %v1175, %v1174
  %v1183 = vpack.c.bf16 %v1177, %v1176
  %v1184 = vpack.c.bf16 %v1179, %v1178
  %v1185 = vpack.c.bf16 %v1181, %v1180
  %v1186 = vld [vmem:[%s18] sm:$0x1]
  %v1187 = vld [vmem:[%s19] sm:$0x3]
  %1189 = vset.pattern.permute.xlu0 0
  %1190 = vperm.xlu0 %1189, %v1187
  %v1191 = vpop.permute.xlu0 %1190
  %vm1193 = vcmask 523264
  %v1195 = vsel %vm1193, %v1186, 0
  %1197 = vmatprep.subr.bf16.mxu0 0
  %1198 = vmatpush1.bf16.msra.mxu0 %v1182
  %1199 = vmatprep.subr.bf16.mxu0 0
  %1200 = vmatpush1.bf16.msra.mxu0 %v1183
  %1201 = vmatprep.subr.bf16.mxu0 0
  %1202 = vmatpush1.bf16.msra.mxu0 %v1184
  %1203 = vmatprep.subr.bf16.mxu0 0
  %1204 = vmatpush1.bf16.msra.mxu0 %v1185
  %1205 = vmatprep.subr.bf16.mxu0 0
  %1206 = vmatpush1.bf16.msra.mxu0 0
  %1207 = vmatprep.subr.bf16.mxu0 0
  %1208 = vmatpush1.bf16.msra.mxu0 0
  %1209 = vmatprep.subr.bf16.mxu0 0
  %1210 = vmatpush1.bf16.msra.mxu0 0
  %1211 = vmatprep.subr.bf16.mxu0 0
  %1212 = vmatpush1.bf16.msra.mxu0 0
  %1213 = vmatprep.subr.bf16.mxu0 0
  %1214 = vmatpush1.bf16.msra.mxu0 0
  %1215 = vmatprep.subr.bf16.mxu0 0
  %1216 = vmatpush1.bf16.msra.mxu0 0
  %1217 = vmatprep.subr.bf16.mxu0 0
  %1218 = vmatpush1.bf16.msra.mxu0 0
  %1219 = vmatprep.subr.bf16.mxu0 0
  %1220 = vmatpush1.bf16.msra.mxu0 0
  %1221 = vmatprep.subr.bf16.mxu0 0
  %1222 = vmatpush1.bf16.msra.mxu0 0
  %1223 = vmatprep.subr.bf16.mxu0 0
  %1224 = vmatpush1.bf16.msra.mxu0 0
  %1225 = vmatprep.subr.bf16.mxu0 0
  %1226 = vmatpush1.bf16.msra.mxu0 0
  %1227 = vmatprep.subr.bf16.mxu0 0
  %1228 = vmatpush1.bf16.msra.mxu0 0
  %1229 = vmatprep.mubr.bf16.mxu0 0
  %1230 = vmatmul.mubr.bf16.gmra.mrb[0].mxu0 %v1195
  %v1231 = vpop.f32.mrb[0].mxu0
  %v1232 = vadd.f32 %v1191, %v1231
  %v1233 = vpop.f32.mrb[0].mxu0
  %v1234 = vpop.f32.mrb[0].mxu0
  %v1235 = vpop.f32.mrb[0].mxu0
  %1236 = vdwg.mxu0
  %v1239 = vunpack.c.l.s4 1966171168
  %v1240 = vunpack.c.0.s8 %v1239
  %v1241 = vlaneseq
  %v1242 = vshrl.u32 %v1241, 7
  %v1243 = vsub.s32 %v1240, %v1242
  %v1244 = vrot.slane %v1232, %v1243
  %v1245 = vcombine.high %v1244, %v1244
  %v1247 = vunpack.c.l.s4 1966171168
  %v1248 = vunpack.c.0.s8 %v1247
  %v1249 = vlaneseq
  %v1250 = vshrl.u32 %v1249, 7
  %v1251 = vsub.s32 %v1248, %v1250
  %v1252 = vrot.slane %v1245, %v1251
  %v1254 = vsel %vm527, %v1252, %v1232
  %v1255 = vxor.u32 %v1254, 2147483648
  %v1256 = vmul.f32 %v1255, 1.442695
  %v1257 = vpow.pop %v1256
  %v1258 = vadd.f32 %v1257, 1.0
  %v1259 = vrcp.pop %v1258
  %v1260 = vmul.f32 1.0, %v1259
  %1261 = vst [vmem:[%s20] sm:$0x1] %v1260
  // Predicated region
  $region82: #{fused_mlp_forward.1} parent=0 // pred_check
    _
  $region83: #{fused_mlp_forward.1} parent=0 // pred_check_branch
    %1263 = sbr.rel (0) target = $region85
  $region84: #{fused_mlp_forward.1} parent=0 // pred_region
    _
  $region85: #{fused_mlp_forward.1} parent=0 // pred_fallthru
    _
  // Predicated region
  $region86: #{fused_mlp_forward.1} parent=0 // pred_check
    _
  $region87: #{fused_mlp_forward.1} parent=0 // pred_check_branch
    %1265 = sbr.rel (0) target = $region89
  $region88: #{fused_mlp_forward.1} parent=0 // pred_region
    _
  $region89: #{fused_mlp_forward.1} parent=0 // pred_fallthru
    _

</llo_original>
